<compile_context>
chip_gen: v5e
topology: v5e:2x2
jax: 0.10.0
libtpu: 0.0.40
codegen_flags: <defaults>
</compile_context>

<pallas_src>
import functools

import jax
import jax.numpy as jnp
import numpy as np
from jax.experimental import pallas as pl
from jax.experimental.pallas import tpu as pltpu


def _softmax_lastdim(s):
    """Row softmax in f32; the divide goes to the EUP via approx reciprocal."""
    m = jnp.max(s, axis=-1, keepdims=True)
    e = jnp.exp(s - m)
    return e * pl.reciprocal(jnp.sum(e, axis=-1, keepdims=True), approx=True)


def scft_kernel(wq_ref, wkt_ref, wv_ref, vs_ref, vr_ref, vrt_ref,
                ci_ref, ltr_ref, *, bs, c, hw, gamma):
    bf16 = jnp.bfloat16
    f32 = jnp.float32

    # Weights (W_q already scaled by 1/sqrt(C) in the wrapper; wkt == W_k^T).
    wq = wq_ref[...].astype(bf16)           # (C, C)
    wkt = wkt_ref[...].astype(bf16)         # (C, C)
    wv = wv_ref[...].astype(bf16)           # (C, C)

    vs_b16 = vs_ref[...].astype(bf16)       # (C, B*HW)
    vr_b16 = vr_ref[...].astype(bf16)       # (C, B*HW)
    vrt_b16 = vrt_ref[...].astype(bf16)     # (B*HW, C)

    # Three independent whole-batch projections (MXU, bf16 in / f32 acc),
    # each cast to bf16 exactly once before the per-batch loop.
    q = jnp.dot(wq, vs_b16, preferred_element_type=f32).astype(bf16)      # (C, B*HW)
    kT = jnp.dot(vrt_b16, wkt, preferred_element_type=f32).astype(bf16)   # (B*HW, C)
    v = jnp.dot(wv, vr_b16, preferred_element_type=f32).astype(bf16)      # (C, B*HW)

    # Single hinge accumulator -> one XLU reduction at the very end.
    hinge_acc = jnp.zeros((c, hw), f32)

    # bs is tiny; this Python loop is fully unrolled at trace time.
    for b in range(bs):
        nb = (b + 1) % bs                   # "negative" keys = next batch (rolled)
        q_b = q[:, b * hw:(b + 1) * hw]     # (C, HW) bf16

        # Keys arrive pre-transposed; pos/neg blocks are sublane slices of kT
        # and the lane-concat of two 128-lane-aligned pieces is pure vreg
        # placement.  Scores is a canonical (C,HW)@(HW,2C) MXU matmul.
        keysT = jnp.concatenate(
            [kT[b * hw:(b + 1) * hw, :], kT[nb * hw:(nb + 1) * hw, :]],
            axis=1)                                                   # (HW, 2C)
        scores = jnp.dot(q_b, keysT, preferred_element_type=f32)     # (C, 2C)

        a_pos = _softmax_lastdim(scores[:, :c])                      # (C, C)
        a_neg = _softmax_lastdim(scores[:, c:])                      # (C, C)

        # Fused positive+negative values: (2C,C)@(C,HW) -> (2C,HW).
        alphas = jnp.concatenate([a_pos, a_neg], axis=0).astype(bf16)
        vals = jnp.dot(alphas, v[:, b * hw:(b + 1) * hw],
                       preferred_element_type=f32)                   # (2C, HW)
        v_asta = vals[:c]                                            # (C, HW)
        v_neg = vals[c:]                                             # (C, HW)

        # Direct sub-tile store of the residual result (no lane concat, no
        # second full-size f32 temp).
        ci_ref[:, b * hw:(b + 1) * hw] = vs_ref[:, b * hw:(b + 1) * hw] + v_asta

        hinge_acc = hinge_acc + jnp.maximum(v_neg - v_asta + gamma, 0.0)

    ltr_ref[0] = jnp.sum(hinge_acc)                                  # SMEM scalar


def scft_forward(V_r, V_s, W_q, W_k, W_v, gamma=12.0):
    bs, c, hw = V_r.shape
    coef = float(c) ** 0.5
    h = int(round(hw ** 0.5))
    assert h * h == hw, "SCFT expects a square spatial map"

    # Lane-dense layout plumbing (no compute):
    #   V_s, V_r -> (C, B*HW) slabs; V_r additionally -> (B*HW, C) so the
    #   kernel can produce K^T without any in-kernel transpose.
    # These are tiny (~128 KB) XLA ops around a latency-bound kernel; if SCFT
    # is called standalone, profile them with xprof summing ALL ops of the jit.
    V_s2 = jnp.transpose(V_s, (1, 0, 2)).reshape(c, bs * hw)
    V_r2 = jnp.transpose(V_r, (1, 0, 2)).reshape(c, bs * hw)
    V_rT = jnp.transpose(V_r, (0, 2, 1)).reshape(bs * hw, c)

    # Fold 1/sqrt(C) into the Q weight (trace-time, zero kernel cost) and
    # pre-transpose W_k so K^T = V_r^T @ W_k^T is a canonical matmul.
    W_q_scaled = W_q * jnp.float32(1.0 / coef)
    W_kT = W_k.T

    kernel = functools.partial(scft_kernel, bs=bs, c=c, hw=hw, gamma=gamma)

    ci2, ltr_sum = pl.pallas_call(
        kernel,
        out_shape=(
            jax.ShapeDtypeStruct((c, bs * hw), jnp.float32),
            jax.ShapeDtypeStruct((1,), jnp.float32),
        ),
        grid_spec=pltpu.PrefetchScalarGridSpec(
            num_scalar_prefetch=0,
            grid=(1,),   # whole working set (<1 MiB) fits VMEM on v5e/v6e/v7x
            in_specs=[
                pl.BlockSpec((c, c), lambda i: (0, 0)),             # W_q / sqrt(C)
                pl.BlockSpec((c, c), lambda i: (0, 0)),             # W_k^T
                pl.BlockSpec((c, c), lambda i: (0, 0)),             # W_v
                pl.BlockSpec((c, bs * hw), lambda i: (0, 0)),       # V_s  (C, B*HW)
                pl.BlockSpec((c, bs * hw), lambda i: (0, 0)),       # V_r  (C, B*HW)
                pl.BlockSpec((bs * hw, c), lambda i: (0, 0)),       # V_r^T (B*HW, C)
            ],
            out_specs=(
                pl.BlockSpec((c, bs * hw), lambda i: (0, 0)),       # c_i (C, B*HW)
                pl.BlockSpec(memory_space=pltpu.MemorySpace.SMEM),  # L_tr sum
            ),
        ),
        compiler_params=pltpu.CompilerParams(
            dimension_semantics=("arbitrary",)),
    )(W_q_scaled, W_kT, W_v, V_s2, V_r2, V_rT)

    # TODO(synk): for bs >> 2, tile the batch over a "parallel" grid axis
    # (>=2 batches per step to keep the lane dim >=128) with per-step partial
    # L_tr sums in SMEM reduced here, so v7x's two TensorCores split the work.
    L_tr = ltr_sum[0] / float(bs * c * hw)
    spatial_c_i = ci2.reshape(c, bs, hw).transpose(1, 0, 2).reshape(bs, c, h, h)
    return spatial_c_i, L_tr


def scft_reference(V_r, V_s, W_q, W_k, W_v, gamma=12.0):
    """Pure-JAX f32 reference mirroring the PyTorch forward."""
    bs, c, hw = V_r.shape
    coef = float(c) ** 0.5
    wq_vs = jnp.einsum("ij,bjk->bik", W_q, V_s)
    wk_vr = jnp.einsum("ij,bjk->bik", W_k, V_r).transpose(0, 2, 1)
    alpha = jax.nn.softmax(jnp.einsum("bik,bkj->bij", wq_vs, wk_vr) / coef, axis=-1)
    wv_vr = jnp.einsum("ij,bjk->bik", W_v, V_r)
    v_asta = jnp.einsum("bij,bjk->bik", alpha, wv_vr)
    c_i = V_s + v_asta
    h = int(hw ** 0.5)
    spatial = c_i.reshape(bs, c, h, h)
    wk_vr_neg = jnp.roll(wk_vr, -1, axis=0)
    alpha_neg = jax.nn.softmax(
        jnp.einsum("bik,bkj->bij", wq_vs, wk_vr_neg) / coef, axis=-1)
    v_neg = jnp.einsum("bij,bjk->bik", alpha_neg, wv_vr)
    L_tr = jnp.mean(jax.nn.relu(-v_asta + v_neg + gamma))
    return spatial, L_tr


if __name__ == "__main__":
    # Small shapes consistent with the module: d_channel=128, 8x8 spatial, batch=2.
    bs, c, h = 2, 128, 8
    hw = h * h

    key = jax.random.PRNGKey(0)
    k1, k2, k3, k4, k5 = jax.random.split(key, 5)
    scale = jnp.float32(0.1)  # deterministic synthetic init (randn * 0.1)
    W_q = jax.random.normal(k1, (c, c), jnp.float32) * scale
    W_k = jax.random.normal(k2, (c, c), jnp.float32) * scale
    W_v = jax.random.normal(k3, (c, c), jnp.float32) * scale
    V_r = jax.random.normal(k4, (bs, c, hw), jnp.float32)
    V_s = jax.random.normal(k5, (bs, c, hw), jnp.float32)

    spatial_c_i, L_tr = scft_forward(V_r, V_s, W_q, W_k, W_v)
    spatial_c_i = jax.block_until_ready(spatial_c_i)
    L_tr = jax.block_until_ready(L_tr)

    ref_spatial, ref_L = scft_reference(V_r, V_s, W_q, W_k, W_v)
    assert spatial_c_i.shape == (bs, c, h, h)
    # Kernel matmuls run with bf16 inputs / f32 accumulation (incl. the bf16
    # softmax probabilities feeding the values matmul) -> bf16-level tolerance
    # for the elementwise output; L_tr averages over B*C*HW so it stays tight.
    np.testing.assert_allclose(np.asarray(spatial_c_i), np.asarray(ref_spatial),
                               rtol=2e-2, atol=2e-2)
    np.testing.assert_allclose(float(L_tr), float(ref_L), rtol=5e-3, atol=5e-3)

    print("KERNEL_OK")
</pallas_src>

<mosaic_0001>
module attributes {stable_mosaic.version = 11 : i64} {
  func.func @scft_kernel(%arg0: i32, %arg1: memref<128x128xf32, #tpu.memory_space<vmem>>, %arg2: memref<128x128xf32, #tpu.memory_space<vmem>>, %arg3: memref<128x128xf32, #tpu.memory_space<vmem>>, %arg4: memref<128x128xf32, #tpu.memory_space<vmem>>, %arg5: memref<128x128xf32, #tpu.memory_space<vmem>>, %arg6: memref<128x128xf32, #tpu.memory_space<vmem>>, %arg7: memref<128x128xf32, #tpu.memory_space<vmem>>, %arg8: memref<1xf32, #tpu.memory_space<smem>>) attributes {dimension_semantics = [#tpu.dimension_semantics<arbitrary>], iteration_bounds = array<i64: 1>, scalar_prefetch = 0 : i64, scratch_operands = 0 : i64, tpu.core_type = #tpu.core_type<tc>, window_params = [{pipeline_mode = #tpu.pipeline_mode<synchronous>, transform_indices = @transform_0, window_bounds = array<i64: 128, 128>}, {pipeline_mode = #tpu.pipeline_mode<synchronous>, transform_indices = @transform_1, window_bounds = array<i64: 128, 128>}, {pipeline_mode = #tpu.pipeline_mode<synchronous>, transform_indices = @transform_2, window_bounds = array<i64: 128, 128>}, {pipeline_mode = #tpu.pipeline_mode<synchronous>, transform_indices = @transform_3, window_bounds = array<i64: 128, 128>}, {pipeline_mode = #tpu.pipeline_mode<synchronous>, transform_indices = @transform_4, window_bounds = array<i64: 128, 128>}, {pipeline_mode = #tpu.pipeline_mode<synchronous>, transform_indices = @transform_5, window_bounds = array<i64: 128, 128>}, {pipeline_mode = #tpu.pipeline_mode<synchronous>, transform_indices = @transform_6, window_bounds = array<i64: 128, 128>}, {transform_indices = @transform_7, window_bounds = array<i64: 1>}]} {
    %c0 = arith.constant 0 : index
    %c0_0 = arith.constant 0 : index
    %0 = vector.load %arg1[%c0, %c0_0] : memref<128x128xf32, #tpu.memory_space<vmem>>, vector<128x128xf32>
    %1 = arith.truncf %0 : vector<128x128xf32> to vector<128x128xbf16>
    %c0_1 = arith.constant 0 : index
    %c0_2 = arith.constant 0 : index
    %2 = vector.load %arg2[%c0_1, %c0_2] : memref<128x128xf32, #tpu.memory_space<vmem>>, vector<128x128xf32>
    %3 = arith.truncf %2 : vector<128x128xf32> to vector<128x128xbf16>
    %c0_3 = arith.constant 0 : index
    %c0_4 = arith.constant 0 : index
    %4 = vector.load %arg3[%c0_3, %c0_4] : memref<128x128xf32, #tpu.memory_space<vmem>>, vector<128x128xf32>
    %5 = arith.truncf %4 : vector<128x128xf32> to vector<128x128xbf16>
    %c0_5 = arith.constant 0 : index
    %c0_6 = arith.constant 0 : index
    %6 = vector.load %arg4[%c0_5, %c0_6] : memref<128x128xf32, #tpu.memory_space<vmem>>, vector<128x128xf32>
    %7 = arith.truncf %6 : vector<128x128xf32> to vector<128x128xbf16>
    %c0_7 = arith.constant 0 : index
    %c0_8 = arith.constant 0 : index
    %8 = vector.load %arg5[%c0_7, %c0_8] : memref<128x128xf32, #tpu.memory_space<vmem>>, vector<128x128xf32>
    %9 = arith.truncf %8 : vector<128x128xf32> to vector<128x128xbf16>
    %c0_9 = arith.constant 0 : index
    %c0_10 = arith.constant 0 : index
    %10 = vector.load %arg6[%c0_9, %c0_10] : memref<128x128xf32, #tpu.memory_space<vmem>>, vector<128x128xf32>
    %11 = arith.truncf %10 : vector<128x128xf32> to vector<128x128xbf16>
    %cst = arith.constant dense<0.000000e+00> : vector<128x128xf32>
    %12 = tpu.matmul %1, %7, %cst {dimension_numbers = #tpu.dot_dimension_numbers<[1], [0], [0], [1], [0, 0, 1, 1], [], []>} : vector<128x128xbf16>, vector<128x128xbf16>, vector<128x128xf32> -> vector<128x128xf32>
    %13 = arith.truncf %12 : vector<128x128xf32> to vector<128x128xbf16>
    %cst_11 = arith.constant dense<0.000000e+00> : vector<128x128xf32>
    %14 = tpu.matmul %11, %3, %cst_11 {dimension_numbers = #tpu.dot_dimension_numbers<[1], [0], [0], [1], [0, 0, 1, 1], [], []>} : vector<128x128xbf16>, vector<128x128xbf16>, vector<128x128xf32> -> vector<128x128xf32>
    %15 = arith.truncf %14 : vector<128x128xf32> to vector<128x128xbf16>
    %cst_12 = arith.constant dense<0.000000e+00> : vector<128x128xf32>
    %16 = tpu.matmul %5, %9, %cst_12 {dimension_numbers = #tpu.dot_dimension_numbers<[1], [0], [0], [1], [0, 0, 1, 1], [], []>} : vector<128x128xbf16>, vector<128x128xbf16>, vector<128x128xf32> -> vector<128x128xf32>
    %17 = arith.truncf %16 : vector<128x128xf32> to vector<128x128xbf16>
    %cst_13 = arith.constant 0.000000e+00 : f32
    %18 = vector.broadcast %cst_13 : f32 to vector<128x64xf32>
    %19 = vector.extract_strided_slice %13 {offsets = [0, 0], sizes = [128, 64], strides = [1, 1]} : vector<128x128xbf16> to vector<128x64xbf16>
    %20 = vector.extract_strided_slice %15 {offsets = [0, 0], sizes = [64, 128], strides = [1, 1]} : vector<128x128xbf16> to vector<64x128xbf16>
    %21 = vector.extract_strided_slice %15 {offsets = [64, 0], sizes = [64, 128], strides = [1, 1]} : vector<128x128xbf16> to vector<64x128xbf16>
    %22 = tpu.concatenate %20, %21 in 1 : vector<64x128xbf16>, vector<64x128xbf16> -> vector<64x256xbf16>
    %cst_14 = arith.constant dense<0.000000e+00> : vector<128x256xf32>
    %23 = tpu.matmul %19, %22, %cst_14 {dimension_numbers = #tpu.dot_dimension_numbers<[1], [0], [0], [1], [0, 0, 1, 1], [], []>} : vector<128x64xbf16>, vector<64x256xbf16>, vector<128x256xf32> -> vector<128x256xf32>
    %24 = vector.extract_strided_slice %23 {offsets = [0, 0], sizes = [128, 128], strides = [1, 1]} : vector<128x256xf32> to vector<128x128xf32>
    %cst_15 = arith.constant dense<0xFF800000> : vector<128xf32>
    %25 = vector.multi_reduction <maximumf>, %24, %cst_15 [1] : vector<128x128xf32> to vector<128xf32>
    %26 = vector.shape_cast %25 : vector<128xf32> to vector<128x1xf32>
    %27 = vector.broadcast %26 : vector<128x1xf32> to vector<128x128xf32>
    %28 = arith.subf %24, %27 : vector<128x128xf32>
    %29 = math.exp %28 : vector<128x128xf32>
    %cst_16 = arith.constant dense<0.000000e+00> : vector<128xf32>
    %30 = vector.multi_reduction <add>, %29, %cst_16 [1] : vector<128x128xf32> to vector<128xf32>
    %31 = vector.shape_cast %30 : vector<128xf32> to vector<128x1xf32>
    %32 = tpu.reciprocal %31 {approx = true} : vector<128x1xf32> -> vector<128x1xf32>
    %33 = vector.broadcast %32 : vector<128x1xf32> to vector<128x128xf32>
    %34 = arith.mulf %29, %33 : vector<128x128xf32>
    %35 = vector.extract_strided_slice %23 {offsets = [0, 128], sizes = [128, 128], strides = [1, 1]} : vector<128x256xf32> to vector<128x128xf32>
    %cst_17 = arith.constant dense<0xFF800000> : vector<128xf32>
    %36 = vector.multi_reduction <maximumf>, %35, %cst_17 [1] : vector<128x128xf32> to vector<128xf32>
    %37 = vector.shape_cast %36 : vector<128xf32> to vector<128x1xf32>
    %38 = vector.broadcast %37 : vector<128x1xf32> to vector<128x128xf32>
    %39 = arith.subf %35, %38 : vector<128x128xf32>
    %40 = math.exp %39 : vector<128x128xf32>
    %cst_18 = arith.constant dense<0.000000e+00> : vector<128xf32>
    %41 = vector.multi_reduction <add>, %40, %cst_18 [1] : vector<128x128xf32> to vector<128xf32>
    %42 = vector.shape_cast %41 : vector<128xf32> to vector<128x1xf32>
    %43 = tpu.reciprocal %42 {approx = true} : vector<128x1xf32> -> vector<128x1xf32>
    %44 = vector.broadcast %43 : vector<128x1xf32> to vector<128x128xf32>
    %45 = arith.mulf %40, %44 : vector<128x128xf32>
    %46 = tpu.concatenate %34, %45 in 0 : vector<128x128xf32>, vector<128x128xf32> -> vector<256x128xf32>
    %47 = arith.truncf %46 : vector<256x128xf32> to vector<256x128xbf16>
    %48 = vector.extract_strided_slice %17 {offsets = [0, 0], sizes = [128, 64], strides = [1, 1]} : vector<128x128xbf16> to vector<128x64xbf16>
    %cst_19 = arith.constant dense<0.000000e+00> : vector<256x64xf32>
    %49 = tpu.matmul %47, %48, %cst_19 {dimension_numbers = #tpu.dot_dimension_numbers<[1], [0], [0], [1], [0, 0, 1, 1], [], []>} : vector<256x128xbf16>, vector<128x64xbf16>, vector<256x64xf32> -> vector<256x64xf32>
    %50 = vector.extract_strided_slice %49 {offsets = [0, 0], sizes = [128, 64], strides = [1, 1]} : vector<256x64xf32> to vector<128x64xf32>
    %51 = vector.extract_strided_slice %49 {offsets = [128, 0], sizes = [128, 64], strides = [1, 1]} : vector<256x64xf32> to vector<128x64xf32>
    %c0_20 = arith.constant 0 : index
    %c0_21 = arith.constant 0 : index
    %52 = vector.load %arg4[%c0_20, %c0_21] : memref<128x128xf32, #tpu.memory_space<vmem>>, vector<128x64xf32>
    %53 = arith.addf %52, %50 : vector<128x64xf32>
    %c0_22 = arith.constant 0 : index
    %c0_23 = arith.constant 0 : index
    %54 = vector.load %arg7[%c0_22, %c0_23] : memref<128x128xf32, #tpu.memory_space<vmem>>, vector<128x64xf32>
    tpu.vector_store %arg7[%c0_22, %c0_23], %53 {strides = array<i32>} : memref<128x128xf32, #tpu.memory_space<vmem>>, vector<128x64xf32>,
    %55 = arith.subf %51, %50 : vector<128x64xf32>
    %cst_24 = arith.constant 1.200000e+01 : f32
    %56 = vector.broadcast %cst_24 : f32 to vector<128x64xf32>
    %57 = arith.addf %55, %56 : vector<128x64xf32>
    %cst_25 = arith.constant 0.000000e+00 : f32
    %58 = vector.broadcast %cst_25 : f32 to vector<128x64xf32>
    %59 = arith.maximumf %57, %58 : vector<128x64xf32>
    %60 = arith.addf %18, %59 : vector<128x64xf32>
    %61 = vector.extract_strided_slice %13 {offsets = [0, 64], sizes = [128, 64], strides = [1, 1]} : vector<128x128xbf16> to vector<128x64xbf16>
    %62 = vector.extract_strided_slice %15 {offsets = [64, 0], sizes = [64, 128], strides = [1, 1]} : vector<128x128xbf16> to vector<64x128xbf16>
    %63 = vector.extract_strided_slice %15 {offsets = [0, 0], sizes = [64, 128], strides = [1, 1]} : vector<128x128xbf16> to vector<64x128xbf16>
    %64 = tpu.concatenate %62, %63 in 1 : vector<64x128xbf16>, vector<64x128xbf16> -> vector<64x256xbf16>
    %cst_26 = arith.constant dense<0.000000e+00> : vector<128x256xf32>
    %65 = tpu.matmul %61, %64, %cst_26 {dimension_numbers = #tpu.dot_dimension_numbers<[1], [0], [0], [1], [0, 0, 1, 1], [], []>} : vector<128x64xbf16>, vector<64x256xbf16>, vector<128x256xf32> -> vector<128x256xf32>
    %66 = vector.extract_strided_slice %65 {offsets = [0, 0], sizes = [128, 128], strides = [1, 1]} : vector<128x256xf32> to vector<128x128xf32>
    %cst_27 = arith.constant dense<0xFF800000> : vector<128xf32>
    %67 = vector.multi_reduction <maximumf>, %66, %cst_27 [1] : vector<128x128xf32> to vector<128xf32>
    %68 = vector.shape_cast %67 : vector<128xf32> to vector<128x1xf32>
    %69 = vector.broadcast %68 : vector<128x1xf32> to vector<128x128xf32>
    %70 = arith.subf %66, %69 : vector<128x128xf32>
    %71 = math.exp %70 : vector<128x128xf32>
    %cst_28 = arith.constant dense<0.000000e+00> : vector<128xf32>
    %72 = vector.multi_reduction <add>, %71, %cst_28 [1] : vector<128x128xf32> to vector<128xf32>
    %73 = vector.shape_cast %72 : vector<128xf32> to vector<128x1xf32>
    %74 = tpu.reciprocal %73 {approx = true} : vector<128x1xf32> -> vector<128x1xf32>
    %75 = vector.broadcast %74 : vector<128x1xf32> to vector<128x128xf32>
    %76 = arith.mulf %71, %75 : vector<128x128xf32>
    %77 = vector.extract_strided_slice %65 {offsets = [0, 128], sizes = [128, 128], strides = [1, 1]} : vector<128x256xf32> to vector<128x128xf32>
    %cst_29 = arith.constant dense<0xFF800000> : vector<128xf32>
    %78 = vector.multi_reduction <maximumf>, %77, %cst_29 [1] : vector<128x128xf32> to vector<128xf32>
    %79 = vector.shape_cast %78 : vector<128xf32> to vector<128x1xf32>
    %80 = vector.broadcast %79 : vector<128x1xf32> to vector<128x128xf32>
    %81 = arith.subf %77, %80 : vector<128x128xf32>
    %82 = math.exp %81 : vector<128x128xf32>
    %cst_30 = arith.constant dense<0.000000e+00> : vector<128xf32>
    %83 = vector.multi_reduction <add>, %82, %cst_30 [1] : vector<128x128xf32> to vector<128xf32>
    %84 = vector.shape_cast %83 : vector<128xf32> to vector<128x1xf32>
    %85 = tpu.reciprocal %84 {approx = true} : vector<128x1xf32> -> vector<128x1xf32>
    %86 = vector.broadcast %85 : vector<128x1xf32> to vector<128x128xf32>
    %87 = arith.mulf %82, %86 : vector<128x128xf32>
    %88 = tpu.concatenate %76, %87 in 0 : vector<128x128xf32>, vector<128x128xf32> -> vector<256x128xf32>
    %89 = arith.truncf %88 : vector<256x128xf32> to vector<256x128xbf16>
    %90 = vector.extract_strided_slice %17 {offsets = [0, 64], sizes = [128, 64], strides = [1, 1]} : vector<128x128xbf16> to vector<128x64xbf16>
    %cst_31 = arith.constant dense<0.000000e+00> : vector<256x64xf32>
    %91 = tpu.matmul %89, %90, %cst_31 {dimension_numbers = #tpu.dot_dimension_numbers<[1], [0], [0], [1], [0, 0, 1, 1], [], []>} : vector<256x128xbf16>, vector<128x64xbf16>, vector<256x64xf32> -> vector<256x64xf32>
    %92 = vector.extract_strided_slice %91 {offsets = [0, 0], sizes = [128, 64], strides = [1, 1]} : vector<256x64xf32> to vector<128x64xf32>
    %93 = vector.extract_strided_slice %91 {offsets = [128, 0], sizes = [128, 64], strides = [1, 1]} : vector<256x64xf32> to vector<128x64xf32>
    %c0_32 = arith.constant 0 : index
    %c64 = arith.constant 64 : index
    %94 = vector.load %arg4[%c0_32, %c64] : memref<128x128xf32, #tpu.memory_space<vmem>>, vector<128x64xf32>
    %95 = arith.addf %94, %92 : vector<128x64xf32>
    %c0_33 = arith.constant 0 : index
    %c64_34 = arith.constant 64 : index
    %96 = vector.load %arg7[%c0_33, %c64_34] : memref<128x128xf32, #tpu.memory_space<vmem>>, vector<128x64xf32>
    tpu.vector_store %arg7[%c0_33, %c64_34], %95 {strides = array<i32>} : memref<128x128xf32, #tpu.memory_space<vmem>>, vector<128x64xf32>,
    %97 = arith.subf %93, %92 : vector<128x64xf32>
    %cst_35 = arith.constant 1.200000e+01 : f32
    %98 = vector.broadcast %cst_35 : f32 to vector<128x64xf32>
    %99 = arith.addf %97, %98 : vector<128x64xf32>
    %cst_36 = arith.constant 0.000000e+00 : f32
    %100 = vector.broadcast %cst_36 : f32 to vector<128x64xf32>
    %101 = arith.maximumf %99, %100 : vector<128x64xf32>
    %102 = arith.addf %60, %101 : vector<128x64xf32>
    %103 = vector.shape_cast %102 : vector<128x64xf32> to vector<1x128x64xf32>
    %cst_37 = arith.constant dense<0.000000e+00> : vector<1xf32>
    %104 = vector.multi_reduction <add>, %103, %cst_37 [1, 2] : vector<1x128x64xf32> to vector<1xf32>
    %105 = vector.shape_cast %104 : vector<1xf32> to vector<1x1x1xf32>
    %106 = vector.extract %105[0, 0, 0] : f32 from vector<1x1x1xf32>
    %c0_38 = arith.constant 0 : index
    %107 = memref.load %arg8[%c0_38] : memref<1xf32, #tpu.memory_space<smem>>
    memref.store %106, %arg8[%c0_38] : memref<1xf32, #tpu.memory_space<smem>>
    return
  }
  func.func @transform_0(%arg0: i32) -> (i32, i32) {
    %c0_i32 = arith.constant 0 : i32
    %c0_i32_0 = arith.constant 0 : i32
    %c0_i32_1 = arith.constant 0 : i32
    return %c0_i32, %c0_i32_0 : i32, i32
  }
  func.func @transform_1(%arg0: i32) -> (i32, i32) {
    %c0_i32 = arith.constant 0 : i32
    %c0_i32_0 = arith.constant 0 : i32
    %c0_i32_1 = arith.constant 0 : i32
    return %c0_i32, %c0_i32_0 : i32, i32
  }
  func.func @transform_2(%arg0: i32) -> (i32, i32) {
    %c0_i32 = arith.constant 0 : i32
    %c0_i32_0 = arith.constant 0 : i32
    %c0_i32_1 = arith.constant 0 : i32
    return %c0_i32, %c0_i32_0 : i32, i32
  }
  func.func @transform_3(%arg0: i32) -> (i32, i32) {
    %c0_i32 = arith.constant 0 : i32
    %c0_i32_0 = arith.constant 0 : i32
    %c0_i32_1 = arith.constant 0 : i32
    return %c0_i32, %c0_i32_0 : i32, i32
  }
  func.func @transform_4(%arg0: i32) -> (i32, i32) {
    %c0_i32 = arith.constant 0 : i32
    %c0_i32_0 = arith.constant 0 : i32
    %c0_i32_1 = arith.constant 0 : i32
    return %c0_i32, %c0_i32_0 : i32, i32
  }
  func.func @transform_5(%arg0: i32) -> (i32, i32) {
    %c0_i32 = arith.constant 0 : i32
    %c0_i32_0 = arith.constant 0 : i32
    %c0_i32_1 = arith.constant 0 : i32
    return %c0_i32, %c0_i32_0 : i32, i32
  }
  func.func @transform_6(%arg0: i32) -> (i32, i32) {
    %c0_i32 = arith.constant 0 : i32
    %c0_i32_0 = arith.constant 0 : i32
    %c0_i32_1 = arith.constant 0 : i32
    return %c0_i32, %c0_i32_0 : i32, i32
  }
  func.func @transform_7(%arg0: i32) -> i32 {
    %c0_i32 = arith.constant 0 : i32
    %c0_i32_0 = arith.constant 0 : i32
    return %c0_i32 : i32
  }
}

</mosaic_0001>

<llo_original>
// kernel: tpu_custom_call.1
$region0: #{tpu_custom_call.1}
  #allocation0 [shape = 'u32[]', space=smem, size = 0x4, offset = 0x4, fixed_abs, tag = 'smem constant byte address 0x4 - core index']
  #allocation1 [shape = 'u32[72,128]{1,0:T(1,128)}', space=vmem, size = 0x9000, scoped, tag = 'internal scratch']
  %s0 = inlined_call_operand.hbm [shape: f32[128,128], index: 0, kind: input, shape index: {}]
  %s1 = inlined_call_operand.hbm [shape: f32[128,128], index: 1, kind: input, shape index: {}]
  %s2 = inlined_call_operand.hbm [shape: f32[128,128], index: 2, kind: input, shape index: {}]
  %s3 = inlined_call_operand.hbm [shape: f32[128,128], index: 3, kind: input, shape index: {}]
  %s4 = inlined_call_operand.hbm [shape: f32[128,128], index: 4, kind: input, shape index: {}]
  %s5 = inlined_call_operand.hbm [shape: f32[128,128], index: 5, kind: input, shape index: {}]
  %s6 = inlined_call_operand.hbm [shape: f32[128,128], index: 6, kind: output, shape index: {0}]
  %s7 = inlined_call_operand.hbm [shape: f32[1], index: 7, kind: output, shape index: {1}]
  %8 = xla_tuple %s6, %s7
  %s9 = sld [smem:[#allocation0]]
  $region66: #{tpu_custom_call.1} parent=0
    _
  %s11 = ssub.s32 1, %s9
  %s12 = scalar_select 0, %s11, %s9
  $region1: #{tpu_custom_call.1} parent=0
    #allocation2 [shape = 'u8[65536]{0}', space=vmem, size = 0x10000, scoped, tag = 'input window, operand 0, single buffered']
    #allocation3 [shape = 's32[1]{0}', space=sflag, size = 0x4, scoped, tag = 'scoped memory for tpu_custom_call.1']
    #allocation4 [shape = 's32[1]{0}', space=sflag, size = 0x4, scoped, tag = 'scoped memory for tpu_custom_call.1']
    #allocation5 [shape = 's32[1]{0}', space=sflag, size = 0x4, scoped, tag = 'scoped memory for tpu_custom_call.1']
    #allocation6 [shape = 'u8[65536]{0}', space=vmem, size = 0x10000, scoped, tag = 'input window, operand 1, single buffered']
    #allocation7 [shape = 's32[1]{0}', space=sflag, size = 0x4, scoped, tag = 'scoped memory for tpu_custom_call.1']
    #allocation8 [shape = 'u8[65536]{0}', space=vmem, size = 0x10000, scoped, tag = 'input window, operand 2, single buffered']
    #allocation9 [shape = 'u8[65536]{0}', space=vmem, size = 0x10000, scoped, tag = 'input window, operand 3, single buffered']
    #allocation10 [shape = 's32[1]{0}', space=sflag, size = 0x4, scoped, tag = 'scoped memory for tpu_custom_call.1']
    #allocation11 [shape = 'u8[65536]{0}', space=vmem, size = 0x10000, scoped, tag = 'input window, operand 4, single buffered']
    #allocation12 [shape = 'u8[65536]{0}', space=vmem, size = 0x10000, scoped, tag = 'input window, operand 5, single buffered']
    #allocation13 [shape = 's32[1]{0}', space=sflag, size = 0x4, scoped, tag = 'scoped memory for tpu_custom_call.1']
    #allocation14 [shape = 'u8[65536]{0}', space=vmem, size = 0x10000, scoped, tag = 'output window, operand 0, single buffered']
    #allocation15 [shape = 'u8[512]{0}', space=smem, size = 0x200, scoped, tag = 'output window, operand 1, single buffered']
    %13 = vsyncpa [#allocation3], 0
    %14 = vsyncpa [#allocation7], 0
    %15 = vsyncpa [#allocation10], 0
    %16 = vsyncpa [#allocation13], 0
    %17 = vsyncpa [#allocation4], 0
    %18 = vsyncpa [#allocation5], 0
    // Predicated region
    $region2: #{tpu_custom_call.1} parent=1 // pred_check
      _
    $region3: #{tpu_custom_call.1} parent=1 // pred_check_branch
      %20 = sbr.rel (0) target = $region5
    $region4: #{tpu_custom_call.1} parent=1 // pred_region
      %22 = vsyncadd [#allocation3], 0
      %s23 = sshll.u32 %s0, 4
      %s24 = int_to_ptr.hbm [resolvable:$true] %s23
      %s25 = sshll.u32 [#allocation2], 4
      %s26 = int_to_ptr.vmem [resolvable:$true] %s25
      %31 = dma.hbm_to_vmem [thread:$0]  %s24, 2048, %s26, [#allocation3], 128, 128, 8
    $region5: #{tpu_custom_call.1} parent=1 // pred_fallthru
      _
    // Predicated region
    $region6: #{tpu_custom_call.1} parent=1 // pred_check
      _
    $region7: #{tpu_custom_call.1} parent=1 // pred_check_branch
      %33 = sbr.rel (0) target = $region9
    $region8: #{tpu_custom_call.1} parent=1 // pred_region
      %35 = vsyncadd [#allocation7], 0
      %s36 = sshll.u32 %s1, 4
      %s37 = int_to_ptr.hbm [resolvable:$true] %s36
      %s38 = sshll.u32 [#allocation6], 4
      %s39 = int_to_ptr.vmem [resolvable:$true] %s38
      %44 = dma.hbm_to_vmem [thread:$0]  %s37, 2048, %s39, [#allocation7], 128, 128, 8
    $region9: #{tpu_custom_call.1} parent=1 // pred_fallthru
      _
    // Predicated region
    $region10: #{tpu_custom_call.1} parent=1 // pred_check
      _
    $region11: #{tpu_custom_call.1} parent=1 // pred_check_branch
      %46 = sbr.rel (0) target = $region13
    $region12: #{tpu_custom_call.1} parent=1 // pred_region
      %48 = vsyncadd [#allocation7], 0
      %s49 = sshll.u32 %s2, 4
      %s50 = int_to_ptr.hbm [resolvable:$true] %s49
      %s51 = sshll.u32 [#allocation8], 4
      %s52 = int_to_ptr.vmem [resolvable:$true] %s51
      %57 = dma.hbm_to_vmem [thread:$0]  %s50, 2048, %s52, [#allocation7], 128, 128, 8
    $region13: #{tpu_custom_call.1} parent=1 // pred_fallthru
      _
    // Predicated region
    $region14: #{tpu_custom_call.1} parent=1 // pred_check
      _
    $region15: #{tpu_custom_call.1} parent=1 // pred_check_branch
      %59 = sbr.rel (0) target = $region17
    $region16: #{tpu_custom_call.1} parent=1 // pred_region
      %61 = vsyncadd [#allocation10], 0
      %s62 = sshll.u32 %s3, 4
      %s63 = int_to_ptr.hbm [resolvable:$true] %s62
      %s64 = sshll.u32 [#allocation9], 4
      %s65 = int_to_ptr.vmem [resolvable:$true] %s64
      %70 = dma.hbm_to_vmem [thread:$0]  %s63, 2048, %s65, [#allocation10], 128, 128, 8
    $region17: #{tpu_custom_call.1} parent=1 // pred_fallthru
      _
    // Predicated region
    $region18: #{tpu_custom_call.1} parent=1 // pred_check
      _
    $region19: #{tpu_custom_call.1} parent=1 // pred_check_branch
      %72 = sbr.rel (0) target = $region21
    $region20: #{tpu_custom_call.1} parent=1 // pred_region
      %74 = vsyncadd [#allocation10], 0
      %s75 = sshll.u32 %s4, 4
      %s76 = int_to_ptr.hbm [resolvable:$true] %s75
      %s77 = sshll.u32 [#allocation11], 4
      %s78 = int_to_ptr.vmem [resolvable:$true] %s77
      %83 = dma.hbm_to_vmem [thread:$0]  %s76, 2048, %s78, [#allocation10], 128, 128, 8
    $region21: #{tpu_custom_call.1} parent=1 // pred_fallthru
      _
    // Predicated region
    $region22: #{tpu_custom_call.1} parent=1 // pred_check
      _
    $region23: #{tpu_custom_call.1} parent=1 // pred_check_branch
      %85 = sbr.rel (0) target = $region25
    $region24: #{tpu_custom_call.1} parent=1 // pred_region
      %87 = vsyncadd [#allocation13], 0
      %s88 = sshll.u32 %s5, 4
      %s89 = int_to_ptr.hbm [resolvable:$true] %s88
      %s90 = sshll.u32 [#allocation12], 4
      %s91 = int_to_ptr.vmem [resolvable:$true] %s90
      %96 = dma.hbm_to_vmem [thread:$0]  %s89, 2048, %s91, [#allocation13], 128, 128, 8
    $region25: #{tpu_custom_call.1} parent=1 // pred_fallthru
      _
    // Predicated region
    $region26: #{tpu_custom_call.1} parent=1 // pred_check
      _
    $region27: #{tpu_custom_call.1} parent=1 // pred_check_branch
      %98 = sbr.rel (0) target = $region29
    $region28: #{tpu_custom_call.1} parent=1 // pred_region
      %100 = dma.done [#allocation3], 2048
    $region29: #{tpu_custom_call.1} parent=1 // pred_fallthru
      _
    // Predicated region
    $region30: #{tpu_custom_call.1} parent=1 // pred_check
      _
    $region31: #{tpu_custom_call.1} parent=1 // pred_check_branch
      %102 = sbr.rel (0) target = $region33
    $region32: #{tpu_custom_call.1} parent=1 // pred_region
      %104 = dma.done [#allocation7], 2048
    $region33: #{tpu_custom_call.1} parent=1 // pred_fallthru
      _
    // Predicated region
    $region34: #{tpu_custom_call.1} parent=1 // pred_check
      _
    $region35: #{tpu_custom_call.1} parent=1 // pred_check_branch
      %106 = sbr.rel (0) target = $region37
    $region36: #{tpu_custom_call.1} parent=1 // pred_region
      %108 = dma.done [#allocation7], 2048
    $region37: #{tpu_custom_call.1} parent=1 // pred_fallthru
      _
    // Predicated region
    $region38: #{tpu_custom_call.1} parent=1 // pred_check
      _
    $region39: #{tpu_custom_call.1} parent=1 // pred_check_branch
      %110 = sbr.rel (0) target = $region41
    $region40: #{tpu_custom_call.1} parent=1 // pred_region
      %112 = dma.done [#allocation10], 2048
    $region41: #{tpu_custom_call.1} parent=1 // pred_fallthru
      _
    // Predicated region
    $region42: #{tpu_custom_call.1} parent=1 // pred_check
      _
    $region43: #{tpu_custom_call.1} parent=1 // pred_check_branch
      %114 = sbr.rel (0) target = $region45
    $region44: #{tpu_custom_call.1} parent=1 // pred_region
      %116 = dma.done [#allocation10], 2048
    $region45: #{tpu_custom_call.1} parent=1 // pred_fallthru
      _
    // Predicated region
    $region46: #{tpu_custom_call.1} parent=1 // pred_check
      _
    $region47: #{tpu_custom_call.1} parent=1 // pred_check_branch
      %118 = sbr.rel (0) target = $region49
    $region48: #{tpu_custom_call.1} parent=1 // pred_region
      %120 = dma.done [#allocation13], 2048
    $region49: #{tpu_custom_call.1} parent=1 // pred_fallthru
      _
    %v122 = vld [vmem:[#allocation2] sm:$0xff]
    %v123 = vld [vmem:[#allocation2 + $0x8] sm:$0xff]
    %v124 = vld [vmem:[#allocation2 + $0x10] sm:$0xff]
    %v125 = vld [vmem:[#allocation2 + $0x18] sm:$0xff]
    %v126 = vld [vmem:[#allocation2 + $0x20] sm:$0xff]
    %v127 = vld [vmem:[#allocation2 + $0x28] sm:$0xff]
    %v128 = vld [vmem:[#allocation2 + $0x30] sm:$0xff]
    %v129 = vld [vmem:[#allocation2 + $0x38] sm:$0xff]
    %v130 = vld [vmem:[#allocation2 + $0x40] sm:$0xff]
    %v131 = vld [vmem:[#allocation2 + $0x48] sm:$0xff]
    %v132 = vld [vmem:[#allocation2 + $0x50] sm:$0xff]
    %v133 = vld [vmem:[#allocation2 + $0x58] sm:$0xff]
    %v134 = vld [vmem:[#allocation2 + $0x60] sm:$0xff]
    %v135 = vld [vmem:[#allocation2 + $0x68] sm:$0xff]
    %v136 = vld [vmem:[#allocation2 + $0x70] sm:$0xff]
    %v137 = vld [vmem:[#allocation2 + $0x78] sm:$0xff]
    %v138 = vpack.c.bf16 %v123, %v122
    %v139 = vpack.c.bf16 %v125, %v124
    %v140 = vpack.c.bf16 %v127, %v126
    %v141 = vpack.c.bf16 %v129, %v128
    %v142 = vpack.c.bf16 %v131, %v130
    %v143 = vpack.c.bf16 %v133, %v132
    %v144 = vpack.c.bf16 %v135, %v134
    %v145 = vpack.c.bf16 %v137, %v136
    %v146 = vld [vmem:[#allocation6] sm:$0xff]
    %v147 = vld [vmem:[#allocation6 + $0x8] sm:$0xff]
    %v148 = vld [vmem:[#allocation6 + $0x10] sm:$0xff]
    %v149 = vld [vmem:[#allocation6 + $0x18] sm:$0xff]
    %v150 = vld [vmem:[#allocation6 + $0x20] sm:$0xff]
    %v151 = vld [vmem:[#allocation6 + $0x28] sm:$0xff]
    %v152 = vld [vmem:[#allocation6 + $0x30] sm:$0xff]
    %v153 = vld [vmem:[#allocation6 + $0x38] sm:$0xff]
    %v154 = vld [vmem:[#allocation6 + $0x40] sm:$0xff]
    %v155 = vld [vmem:[#allocation6 + $0x48] sm:$0xff]
    %v156 = vld [vmem:[#allocation6 + $0x50] sm:$0xff]
    %v157 = vld [vmem:[#allocation6 + $0x58] sm:$0xff]
    %v158 = vld [vmem:[#allocation6 + $0x60] sm:$0xff]
    %v159 = vld [vmem:[#allocation6 + $0x68] sm:$0xff]
    %v160 = vld [vmem:[#allocation6 + $0x70] sm:$0xff]
    %v161 = vld [vmem:[#allocation6 + $0x78] sm:$0xff]
    %v162 = vpack.c.bf16 %v147, %v146
    %v163 = vpack.c.bf16 %v149, %v148
    %v164 = vpack.c.bf16 %v151, %v150
    %v165 = vpack.c.bf16 %v153, %v152
    %v166 = vpack.c.bf16 %v155, %v154
    %v167 = vpack.c.bf16 %v157, %v156
    %v168 = vpack.c.bf16 %v159, %v158
    %v169 = vpack.c.bf16 %v161, %v160
    %v170 = vld [vmem:[#allocation8] sm:$0xff]
    %v171 = vld [vmem:[#allocation8 + $0x8] sm:$0xff]
    %v172 = vld [vmem:[#allocation8 + $0x10] sm:$0xff]
    %v173 = vld [vmem:[#allocation8 + $0x18] sm:$0xff]
    %v174 = vld [vmem:[#allocation8 + $0x20] sm:$0xff]
    %v175 = vld [vmem:[#allocation8 + $0x28] sm:$0xff]
    %v176 = vld [vmem:[#allocation8 + $0x30] sm:$0xff]
    %v177 = vld [vmem:[#allocation8 + $0x38] sm:$0xff]
    %v178 = vld [vmem:[#allocation8 + $0x40] sm:$0xff]
    %v179 = vld [vmem:[#allocation8 + $0x48] sm:$0xff]
    %v180 = vld [vmem:[#allocation8 + $0x50] sm:$0xff]
    %v181 = vld [vmem:[#allocation8 + $0x58] sm:$0xff]
    %v182 = vld [vmem:[#allocation8 + $0x60] sm:$0xff]
    %v183 = vld [vmem:[#allocation8 + $0x68] sm:$0xff]
    %v184 = vld [vmem:[#allocation8 + $0x70] sm:$0xff]
    %v185 = vld [vmem:[#allocation8 + $0x78] sm:$0xff]
    %v186 = vpack.c.bf16 %v171, %v170
    %v187 = vpack.c.bf16 %v173, %v172
    %v188 = vpack.c.bf16 %v175, %v174
    %v189 = vpack.c.bf16 %v177, %v176
    %v190 = vpack.c.bf16 %v179, %v178
    %v191 = vpack.c.bf16 %v181, %v180
    %v192 = vpack.c.bf16 %v183, %v182
    %v193 = vpack.c.bf16 %v185, %v184
    %v194 = vld [vmem:[#allocation9] sm:$0xff]
    %v195 = vld [vmem:[#allocation9 + $0x8] sm:$0xff]
    %v196 = vld [vmem:[#allocation9 + $0x10] sm:$0xff]
    %v197 = vld [vmem:[#allocation9 + $0x18] sm:$0xff]
    %v198 = vld [vmem:[#allocation9 + $0x20] sm:$0xff]
    %v199 = vld [vmem:[#allocation9 + $0x28] sm:$0xff]
    %v200 = vld [vmem:[#allocation9 + $0x30] sm:$0xff]
    %v201 = vld [vmem:[#allocation9 + $0x38] sm:$0xff]
    %v202 = vld [vmem:[#allocation9 + $0x40] sm:$0xff]
    %v203 = vld [vmem:[#allocation9 + $0x48] sm:$0xff]
    %v204 = vld [vmem:[#allocation9 + $0x50] sm:$0xff]
    %v205 = vld [vmem:[#allocation9 + $0x58] sm:$0xff]
    %v206 = vld [vmem:[#allocation9 + $0x60] sm:$0xff]
    %v207 = vld [vmem:[#allocation9 + $0x68] sm:$0xff]
    %v208 = vld [vmem:[#allocation9 + $0x70] sm:$0xff]
    %v209 = vld [vmem:[#allocation9 + $0x78] sm:$0xff]
    %v210 = vpack.c.bf16 %v195, %v194
    %v211 = vpack.c.bf16 %v197, %v196
    %v212 = vpack.c.bf16 %v199, %v198
    %v213 = vpack.c.bf16 %v201, %v200
    %v214 = vpack.c.bf16 %v203, %v202
    %v215 = vpack.c.bf16 %v205, %v204
    %v216 = vpack.c.bf16 %v207, %v206
    %v217 = vpack.c.bf16 %v209, %v208
    %v218 = vld [vmem:[#allocation11] sm:$0xff]
    %v219 = vld [vmem:[#allocation11 + $0x8] sm:$0xff]
    %v220 = vld [vmem:[#allocation11 + $0x10] sm:$0xff]
    %v221 = vld [vmem:[#allocation11 + $0x18] sm:$0xff]
    %v222 = vld [vmem:[#allocation11 + $0x20] sm:$0xff]
    %v223 = vld [vmem:[#allocation11 + $0x28] sm:$0xff]
    %v224 = vld [vmem:[#allocation11 + $0x30] sm:$0xff]
    %v225 = vld [vmem:[#allocation11 + $0x38] sm:$0xff]
    %v226 = vld [vmem:[#allocation11 + $0x40] sm:$0xff]
    %v227 = vld [vmem:[#allocation11 + $0x48] sm:$0xff]
    %v228 = vld [vmem:[#allocation11 + $0x50] sm:$0xff]
    %v229 = vld [vmem:[#allocation11 + $0x58] sm:$0xff]
    %v230 = vld [vmem:[#allocation11 + $0x60] sm:$0xff]
    %v231 = vld [vmem:[#allocation11 + $0x68] sm:$0xff]
    %v232 = vld [vmem:[#allocation11 + $0x70] sm:$0xff]
    %v233 = vld [vmem:[#allocation11 + $0x78] sm:$0xff]
    %v234 = vpack.c.bf16 %v219, %v218
    %v235 = vpack.c.bf16 %v221, %v220
    %v236 = vpack.c.bf16 %v223, %v222
    %v237 = vpack.c.bf16 %v225, %v224
    %v238 = vpack.c.bf16 %v227, %v226
    %v239 = vpack.c.bf16 %v229, %v228
    %v240 = vpack.c.bf16 %v231, %v230
    %v241 = vpack.c.bf16 %v233, %v232
    %v242 = vld [vmem:[#allocation12] sm:$0xff]
    %v243 = vld [vmem:[#allocation12 + $0x8] sm:$0xff]
    %v244 = vld [vmem:[#allocation12 + $0x10] sm:$0xff]
    %v245 = vld [vmem:[#allocation12 + $0x18] sm:$0xff]
    %v246 = vld [vmem:[#allocation12 + $0x20] sm:$0xff]
    %v247 = vld [vmem:[#allocation12 + $0x28] sm:$0xff]
    %v248 = vld [vmem:[#allocation12 + $0x30] sm:$0xff]
    %v249 = vld [vmem:[#allocation12 + $0x38] sm:$0xff]
    %v250 = vld [vmem:[#allocation12 + $0x40] sm:$0xff]
    %v251 = vld [vmem:[#allocation12 + $0x48] sm:$0xff]
    %v252 = vld [vmem:[#allocation12 + $0x50] sm:$0xff]
    %v253 = vld [vmem:[#allocation12 + $0x58] sm:$0xff]
    %v254 = vld [vmem:[#allocation12 + $0x60] sm:$0xff]
    %v255 = vld [vmem:[#allocation12 + $0x68] sm:$0xff]
    %v256 = vld [vmem:[#allocation12 + $0x70] sm:$0xff]
    %v257 = vld [vmem:[#allocation12 + $0x78] sm:$0xff]
    %v258 = vpack.c.bf16 %v243, %v242
    %v259 = vpack.c.bf16 %v245, %v244
    %v260 = vpack.c.bf16 %v247, %v246
    %v261 = vpack.c.bf16 %v249, %v248
    %v262 = vpack.c.bf16 %v251, %v250
    %v263 = vpack.c.bf16 %v253, %v252
    %v264 = vpack.c.bf16 %v255, %v254
    %v265 = vpack.c.bf16 %v257, %v256
    %266 = vmatpush.bf16.msra.mxu0 %v217
    %267 = vmatpush.bf16.msra.mxu0 %v216
    %268 = vmatpush.bf16.msra.mxu0 %v215
    %269 = vmatpush.bf16.msra.mxu0 %v214
    %270 = vmatpush.bf16.msra.mxu0 %v213
    %271 = vmatpush.bf16.msra.mxu0 %v212
    %272 = vmatpush.bf16.msra.mxu0 %v211
    %273 = vmatpush.bf16.msra.mxu0 %v210
    %274 = vmatmul.bf16.gmra.mxu0 %v138
    %v275 = vpop.f32.mrf.mxu0
    %v276 = vadd.f32 0.0, %v275
    %v277 = vpop.f32.mrf.mxu0
    %v278 = vadd.f32 0.0, %v277
    %279 = vmatmul.bf16.gmra.mxu0 %v139
    %v280 = vpop.f32.mrf.mxu0
    %v281 = vadd.f32 0.0, %v280
    %v282 = vpop.f32.mrf.mxu0
    %v283 = vadd.f32 0.0, %v282
    %284 = vmatmul.bf16.gmra.mxu0 %v140
    %v285 = vpop.f32.mrf.mxu0
    %v286 = vadd.f32 0.0, %v285
    %v287 = vpop.f32.mrf.mxu0
    %v288 = vadd.f32 0.0, %v287
    %289 = vmatmul.bf16.gmra.mxu0 %v141
    %v290 = vpop.f32.mrf.mxu0
    %v291 = vadd.f32 0.0, %v290
    %v292 = vpop.f32.mrf.mxu0
    %v293 = vadd.f32 0.0, %v292
    %294 = vmatmul.bf16.gmra.mxu0 %v142
    %v295 = vpop.f32.mrf.mxu0
    %v296 = vadd.f32 0.0, %v295
    %v297 = vpop.f32.mrf.mxu0
    %v298 = vadd.f32 0.0, %v297
    %299 = vmatmul.bf16.gmra.mxu0 %v143
    %v300 = vpop.f32.mrf.mxu0
    %v301 = vadd.f32 0.0, %v300
    %v302 = vpop.f32.mrf.mxu0
    %v303 = vadd.f32 0.0, %v302
    %304 = vmatmul.bf16.gmra.mxu0 %v144
    %v305 = vpop.f32.mrf.mxu0
    %v306 = vadd.f32 0.0, %v305
    %v307 = vpop.f32.mrf.mxu0
    %v308 = vadd.f32 0.0, %v307
    %309 = vmatmul.bf16.gmra.mxu0 %v145
    %v310 = vpop.f32.mrf.mxu0
    %v311 = vadd.f32 0.0, %v310
    %v312 = vpop.f32.mrf.mxu0
    %v313 = vadd.f32 0.0, %v312
    %314 = vdwg.mxu0
    %v315 = vpack.c.bf16 %v276, %v276
    %v316 = vpack.c.bf16 %v278, %v278
    %v317 = vpack.c.bf16 %v281, %v281
    %v318 = vpack.c.bf16 %v283, %v283
    %v319 = vpack.c.bf16 %v286, %v286
    %v320 = vpack.c.bf16 %v288, %v288
    %v321 = vpack.c.bf16 %v291, %v291
    %v322 = vpack.c.bf16 %v293, %v293
    %v323 = vpack.c.bf16 %v296, %v296
    %v324 = vpack.c.bf16 %v298, %v298
    %v325 = vpack.c.bf16 %v301, %v301
    %v326 = vpack.c.bf16 %v303, %v303
    %v327 = vpack.c.bf16 %v306, %v306
    %v328 = vpack.c.bf16 %v308, %v308
    %v329 = vpack.c.bf16 %v311, %v311
    %v330 = vpack.c.bf16 %v313, %v313
    %331 = vmatpush.bf16.msra.mxu0 %v169
    %332 = vmatpush.bf16.msra.mxu0 %v168
    %333 = vmatpush.bf16.msra.mxu0 %v167
    %334 = vmatpush.bf16.msra.mxu0 %v166
    %335 = vmatpush.bf16.msra.mxu0 %v165
    %336 = vmatpush.bf16.msra.mxu0 %v164
    %337 = vmatpush.bf16.msra.mxu0 %v163
    %338 = vmatpush.bf16.msra.mxu0 %v162
    %339 = vmatmul.bf16.gmra.mxu0 %v258
    %v340 = vpop.f32.mrf.mxu0
    %v341 = vadd.f32 0.0, %v340
    %v342 = vpop.f32.mrf.mxu0
    %v343 = vadd.f32 0.0, %v342
    %344 = vmatmul.bf16.gmra.mxu0 %v259
    %v345 = vpop.f32.mrf.mxu0
    %v346 = vadd.f32 0.0, %v345
    %v347 = vpop.f32.mrf.mxu0
    %v348 = vadd.f32 0.0, %v347
    %349 = vmatmul.bf16.gmra.mxu0 %v260
    %v350 = vpop.f32.mrf.mxu0
    %v351 = vadd.f32 0.0, %v350
    %v352 = vpop.f32.mrf.mxu0
    %v353 = vadd.f32 0.0, %v352
    %354 = vmatmul.bf16.gmra.mxu0 %v261
    %v355 = vpop.f32.mrf.mxu0
    %v356 = vadd.f32 0.0, %v355
    %v357 = vpop.f32.mrf.mxu0
    %v358 = vadd.f32 0.0, %v357
    %359 = vmatmul.bf16.gmra.mxu0 %v262
    %v360 = vpop.f32.mrf.mxu0
    %v361 = vadd.f32 0.0, %v360
    %v362 = vpop.f32.mrf.mxu0
    %v363 = vadd.f32 0.0, %v362
    %364 = vmatmul.bf16.gmra.mxu0 %v263
    %v365 = vpop.f32.mrf.mxu0
    %v366 = vadd.f32 0.0, %v365
    %v367 = vpop.f32.mrf.mxu0
    %v368 = vadd.f32 0.0, %v367
    %369 = vmatmul.bf16.gmra.mxu0 %v264
    %v370 = vpop.f32.mrf.mxu0
    %v371 = vadd.f32 0.0, %v370
    %v372 = vpop.f32.mrf.mxu0
    %v373 = vadd.f32 0.0, %v372
    %374 = vmatmul.bf16.gmra.mxu0 %v265
    %v375 = vpop.f32.mrf.mxu0
    %v376 = vadd.f32 0.0, %v375
    %v377 = vpop.f32.mrf.mxu0
    %v378 = vadd.f32 0.0, %v377
    %379 = vdwg.mxu0
    %v380 = vpack.c.bf16 %v341, %v341
    %v381 = vpack.c.bf16 %v343, %v343
    %v382 = vpack.c.bf16 %v346, %v346
    %v383 = vpack.c.bf16 %v348, %v348
    %v384 = vpack.c.bf16 %v351, %v351
    %v385 = vpack.c.bf16 %v353, %v353
    %v386 = vpack.c.bf16 %v356, %v356
    %v387 = vpack.c.bf16 %v358, %v358
    %v388 = vpack.c.bf16 %v361, %v361
    %v389 = vpack.c.bf16 %v363, %v363
    %v390 = vpack.c.bf16 %v366, %v366
    %v391 = vpack.c.bf16 %v368, %v368
    %v392 = vpack.c.bf16 %v371, %v371
    %v393 = vpack.c.bf16 %v373, %v373
    %v394 = vpack.c.bf16 %v376, %v376
    %v395 = vpack.c.bf16 %v378, %v378
    %396 = vmatpush.bf16.msra.mxu0 %v241
    %397 = vmatpush.bf16.msra.mxu0 %v240
    %398 = vmatpush.bf16.msra.mxu0 %v239
    %399 = vmatpush.bf16.msra.mxu0 %v238
    %400 = vmatpush.bf16.msra.mxu0 %v237
    %401 = vmatpush.bf16.msra.mxu0 %v236
    %402 = vmatpush.bf16.msra.mxu0 %v235
    %403 = vmatpush.bf16.msra.mxu0 %v234
    %404 = vmatmul.bf16.gmra.mxu0 %v186
    %v405 = vpop.f32.mrf.mxu0
    %v406 = vadd.f32 0.0, %v405
    %v407 = vpop.f32.mrf.mxu0
    %v408 = vadd.f32 0.0, %v407
    %409 = vmatmul.bf16.gmra.mxu0 %v187
    %v410 = vpop.f32.mrf.mxu0
    %v411 = vadd.f32 0.0, %v410
    %v412 = vpop.f32.mrf.mxu0
    %v413 = vadd.f32 0.0, %v412
    %414 = vmatmul.bf16.gmra.mxu0 %v188
    %v415 = vpop.f32.mrf.mxu0
    %v416 = vadd.f32 0.0, %v415
    %v417 = vpop.f32.mrf.mxu0
    %v418 = vadd.f32 0.0, %v417
    %419 = vmatmul.bf16.gmra.mxu0 %v189
    %v420 = vpop.f32.mrf.mxu0
    %v421 = vadd.f32 0.0, %v420
    %v422 = vpop.f32.mrf.mxu0
    %v423 = vadd.f32 0.0, %v422
    %424 = vmatmul.bf16.gmra.mxu0 %v190
    %v425 = vpop.f32.mrf.mxu0
    %v426 = vadd.f32 0.0, %v425
    %v427 = vpop.f32.mrf.mxu0
    %v428 = vadd.f32 0.0, %v427
    %429 = vmatmul.bf16.gmra.mxu0 %v191
    %v430 = vpop.f32.mrf.mxu0
    %v431 = vadd.f32 0.0, %v430
    %v432 = vpop.f32.mrf.mxu0
    %v433 = vadd.f32 0.0, %v432
    %434 = vmatmul.bf16.gmra.mxu0 %v192
    %v435 = vpop.f32.mrf.mxu0
    %v436 = vadd.f32 0.0, %v435
    %v437 = vpop.f32.mrf.mxu0
    %v438 = vadd.f32 0.0, %v437
    %439 = vmatmul.bf16.gmra.mxu0 %v193
    %v440 = vpop.f32.mrf.mxu0
    %v441 = vadd.f32 0.0, %v440
    %v442 = vpop.f32.mrf.mxu0
    %v443 = vadd.f32 0.0, %v442
    %444 = vdwg.mxu0
    %v445 = vpack.c.bf16 %v406, %v406
    %v446 = vpack.c.bf16 %v408, %v408
    %v447 = vpack.c.bf16 %v411, %v411
    %v448 = vpack.c.bf16 %v413, %v413
    %v449 = vpack.c.bf16 %v416, %v416
    %v450 = vpack.c.bf16 %v418, %v418
    %v451 = vpack.c.bf16 %v421, %v421
    %v452 = vpack.c.bf16 %v423, %v423
    %v453 = vpack.c.bf16 %v426, %v426
    %v454 = vpack.c.bf16 %v428, %v428
    %v455 = vpack.c.bf16 %v431, %v431
    %v456 = vpack.c.bf16 %v433, %v433
    %v457 = vpack.c.bf16 %v436, %v436
    %v458 = vpack.c.bf16 %v438, %v438
    %v459 = vpack.c.bf16 %v441, %v441
    %v460 = vpack.c.bf16 %v443, %v443
    %v469 = vunpack.c.l.b16 %v380
    %v470 = vunpack.c.l.b16 %v381
    %v471 = vunpack.c.l.b16 %v382
    %v472 = vunpack.c.l.b16 %v383
    %v473 = vunpack.c.l.b16 %v384
    %v474 = vunpack.c.l.b16 %v385
    %v475 = vunpack.c.l.b16 %v386
    %v476 = vunpack.c.l.b16 %v387
    %v477 = vpack.c.b16 %v470, %v469
    %v478 = vpack.c.b16 %v472, %v471
    %v479 = vpack.c.b16 %v474, %v473
    %v480 = vpack.c.b16 %v476, %v475
    %v493 = vunpack.c.l.b16 %v388
    %v494 = vunpack.c.l.b16 %v389
    %v495 = vunpack.c.l.b16 %v390
    %v496 = vunpack.c.l.b16 %v391
    %v497 = vunpack.c.l.b16 %v392
    %v498 = vunpack.c.l.b16 %v393
    %v499 = vunpack.c.l.b16 %v394
    %v500 = vunpack.c.l.b16 %v395
    %v501 = vpack.c.b16 %v494, %v493
    %v502 = vpack.c.b16 %v496, %v495
    %v503 = vpack.c.b16 %v498, %v497
    %v504 = vpack.c.b16 %v500, %v499
    %v525 = vunpack.c.l.b16 %v315
    %v526 = vunpack.c.l.b16 %v316
    %v527 = vunpack.c.l.b16 %v317
    %v528 = vunpack.c.l.b16 %v318
    %v529 = vunpack.c.l.b16 %v319
    %v530 = vunpack.c.l.b16 %v320
    %v531 = vunpack.c.l.b16 %v321
    %v532 = vunpack.c.l.b16 %v322
    %v533 = vunpack.c.l.b16 %v323
    %v534 = vunpack.c.l.b16 %v324
    %v535 = vunpack.c.l.b16 %v325
    %v536 = vunpack.c.l.b16 %v326
    %v537 = vunpack.c.l.b16 %v327
    %v538 = vunpack.c.l.b16 %v328
    %v539 = vunpack.c.l.b16 %v329
    %v540 = vunpack.c.l.b16 %v330
    %v541 = vpack.c.b16 %v526, %v525
    %v542 = vpack.c.b16 %v528, %v527
    %v543 = vpack.c.b16 %v530, %v529
    %v544 = vpack.c.b16 %v532, %v531
    %v545 = vpack.c.b16 %v534, %v533
    %v546 = vpack.c.b16 %v536, %v535
    %v547 = vpack.c.b16 %v538, %v537
    %v548 = vpack.c.b16 %v540, %v539
    %vm549 = vcmask 523264
    %v551 = vsel %vm549, %v541, 0
    %v554 = vsel %vm549, %v542, 0
    %v557 = vsel %vm549, %v543, 0
    %v560 = vsel %vm549, %v544, 0
    %v563 = vsel %vm549, %v545, 0
    %v566 = vsel %vm549, %v546, 0
    %v569 = vsel %vm549, %v547, 0
    %v572 = vsel %vm549, %v548, 0
    %574 = vmatpush.bf16.msra.mxu0 0
    %575 = vmatpush.bf16.msra.mxu0 0
    %576 = vmatpush.bf16.msra.mxu0 0
    %577 = vmatpush.bf16.msra.mxu0 0
    %578 = vmatpush.bf16.msra.mxu0 %v480
    %579 = vmatpush.bf16.msra.mxu0 %v479
    %580 = vmatpush.bf16.msra.mxu0 %v478
    %581 = vmatpush.bf16.msra.mxu0 %v477
    %582 = vmatmul.bf16.gmra.mxu0 %v551
    %v583 = vpop.f32.mrf.mxu0
    %v584 = vadd.f32 0.0, %v583
    %v585 = vpop.f32.mrf.mxu0
    %v586 = vadd.f32 0.0, %v585
    %587 = vmatmul.bf16.gmra.mxu0 %v554
    %v588 = vpop.f32.mrf.mxu0
    %v589 = vadd.f32 0.0, %v588
    %v590 = vpop.f32.mrf.mxu0
    %v591 = vadd.f32 0.0, %v590
    %592 = vmatmul.bf16.gmra.mxu0 %v557
    %v593 = vpop.f32.mrf.mxu0
    %v594 = vadd.f32 0.0, %v593
    %v595 = vpop.f32.mrf.mxu0
    %v596 = vadd.f32 0.0, %v595
    %597 = vmatmul.bf16.gmra.mxu0 %v560
    %v598 = vpop.f32.mrf.mxu0
    %v599 = vadd.f32 0.0, %v598
    %v600 = vpop.f32.mrf.mxu0
    %v601 = vadd.f32 0.0, %v600
    %602 = vmatmul.bf16.gmra.mxu0 %v563
    %v603 = vpop.f32.mrf.mxu0
    %v604 = vadd.f32 0.0, %v603
    %v605 = vpop.f32.mrf.mxu0
    %v606 = vadd.f32 0.0, %v605
    %607 = vmatmul.bf16.gmra.mxu0 %v566
    %v608 = vpop.f32.mrf.mxu0
    %v609 = vadd.f32 0.0, %v608
    %v610 = vpop.f32.mrf.mxu0
    %v611 = vadd.f32 0.0, %v610
    %612 = vmatmul.bf16.gmra.mxu0 %v569
    %v613 = vpop.f32.mrf.mxu0
    %v614 = vadd.f32 0.0, %v613
    %v615 = vpop.f32.mrf.mxu0
    %v616 = vadd.f32 0.0, %v615
    %617 = vmatmul.bf16.gmra.mxu0 %v572
    %v618 = vpop.f32.mrf.mxu0
    %v619 = vadd.f32 0.0, %v618
    %v620 = vpop.f32.mrf.mxu0
    %v621 = vadd.f32 0.0, %v620
    %622 = vdwg.mxu0
    %623 = vmatpush.bf16.msra.mxu0 0
    %624 = vmatpush.bf16.msra.mxu0 0
    %625 = vmatpush.bf16.msra.mxu0 0
    %626 = vmatpush.bf16.msra.mxu0 0
    %627 = vmatpush.bf16.msra.mxu0 %v504
    %628 = vmatpush.bf16.msra.mxu0 %v503
    %629 = vmatpush.bf16.msra.mxu0 %v502
    %630 = vmatpush.bf16.msra.mxu0 %v501
    %631 = vmatmul.bf16.gmra.mxu0 %v551
    %v632 = vpop.f32.mrf.mxu0
    %v633 = vadd.f32 0.0, %v632
    %v634 = vpop.f32.mrf.mxu0
    %v635 = vadd.f32 0.0, %v634
    %636 = vmatmul.bf16.gmra.mxu0 %v554
    %v637 = vpop.f32.mrf.mxu0
    %v638 = vadd.f32 0.0, %v637
    %v639 = vpop.f32.mrf.mxu0
    %v640 = vadd.f32 0.0, %v639
    %641 = vmatmul.bf16.gmra.mxu0 %v557
    %v642 = vpop.f32.mrf.mxu0
    %v643 = vadd.f32 0.0, %v642
    %v644 = vpop.f32.mrf.mxu0
    %v645 = vadd.f32 0.0, %v644
    %646 = vmatmul.bf16.gmra.mxu0 %v560
    %v647 = vpop.f32.mrf.mxu0
    %v648 = vadd.f32 0.0, %v647
    %v649 = vpop.f32.mrf.mxu0
    %v650 = vadd.f32 0.0, %v649
    %651 = vmatmul.bf16.gmra.mxu0 %v563
    %v652 = vpop.f32.mrf.mxu0
    %v653 = vadd.f32 0.0, %v652
    %v654 = vpop.f32.mrf.mxu0
    %v655 = vadd.f32 0.0, %v654
    %656 = vmatmul.bf16.gmra.mxu0 %v566
    %v657 = vpop.f32.mrf.mxu0
    %v658 = vadd.f32 0.0, %v657
    %v659 = vpop.f32.mrf.mxu0
    %v660 = vadd.f32 0.0, %v659
    %661 = vmatmul.bf16.gmra.mxu0 %v569
    %v662 = vpop.f32.mrf.mxu0
    %v663 = vadd.f32 0.0, %v662
    %v664 = vpop.f32.mrf.mxu0
    %v665 = vadd.f32 0.0, %v664
    %666 = vmatmul.bf16.gmra.mxu0 %v572
    %v667 = vpop.f32.mrf.mxu0
    %v668 = vadd.f32 0.0, %v667
    %v669 = vpop.f32.mrf.mxu0
    %v670 = vadd.f32 0.0, %v669
    %671 = vdwg.mxu0
    %672 = vmax.xlane.f32.xlu0 %v584
    %v673 = vpop.xlane.xlu0 %672
    %674 = vmax.xlane.f32.xlu0 %v586
    %v675 = vpop.xlane.xlu0 %674
    %676 = vmax.xlane.f32.xlu0 %v589
    %v677 = vpop.xlane.xlu0 %676
    %678 = vmax.xlane.f32.xlu0 %v591
    %v679 = vpop.xlane.xlu0 %678
    %680 = vmax.xlane.f32.xlu0 %v594
    %v681 = vpop.xlane.xlu0 %680
    %682 = vmax.xlane.f32.xlu0 %v596
    %v683 = vpop.xlane.xlu0 %682
    %684 = vmax.xlane.f32.xlu0 %v599
    %v685 = vpop.xlane.xlu0 %684
    %686 = vmax.xlane.f32.xlu0 %v601
    %v687 = vpop.xlane.xlu0 %686
    %688 = vmax.xlane.f32.xlu0 %v604
    %v689 = vpop.xlane.xlu0 %688
    %690 = vmax.xlane.f32.xlu0 %v606
    %v691 = vpop.xlane.xlu0 %690
    %692 = vmax.xlane.f32.xlu0 %v609
    %v693 = vpop.xlane.xlu0 %692
    %694 = vmax.xlane.f32.xlu0 %v611
    %v695 = vpop.xlane.xlu0 %694
    %696 = vmax.xlane.f32.xlu0 %v614
    %v697 = vpop.xlane.xlu0 %696
    %698 = vmax.xlane.f32.xlu0 %v616
    %v699 = vpop.xlane.xlu0 %698
    %700 = vmax.xlane.f32.xlu0 %v619
    %v701 = vpop.xlane.xlu0 %700
    %702 = vmax.xlane.f32.xlu0 %v621
    %v703 = vpop.xlane.xlu0 %702
    %v704 = vsub.f32 %v584, %v673
    %v705 = vsub.f32 %v586, %v675
    %v706 = vsub.f32 %v589, %v677
    %v707 = vsub.f32 %v591, %v679
    %v708 = vsub.f32 %v594, %v681
    %v709 = vsub.f32 %v596, %v683
    %v710 = vsub.f32 %v599, %v685
    %v711 = vsub.f32 %v601, %v687
    %v712 = vsub.f32 %v604, %v689
    %v713 = vsub.f32 %v606, %v691
    %v714 = vsub.f32 %v609, %v693
    %v715 = vsub.f32 %v611, %v695
    %v716 = vsub.f32 %v614, %v697
    %v717 = vsub.f32 %v616, %v699
    %v718 = vsub.f32 %v619, %v701
    %v719 = vsub.f32 %v621, %v703
    %v720 = vmul.f32 %v704, 1.442695
    %v721 = vpow.pop %v720
    %v722 = vmul.f32 %v705, 1.442695
    %v723 = vpow.pop %v722
    %v724 = vmul.f32 %v706, 1.442695
    %v725 = vpow.pop %v724
    %v726 = vmul.f32 %v707, 1.442695
    %v727 = vpow.pop %v726
    %v728 = vmul.f32 %v708, 1.442695
    %v729 = vpow.pop %v728
    %v730 = vmul.f32 %v709, 1.442695
    %v731 = vpow.pop %v730
    %v732 = vmul.f32 %v710, 1.442695
    %v733 = vpow.pop %v732
    %v734 = vmul.f32 %v711, 1.442695
    %v735 = vpow.pop %v734
    %v736 = vmul.f32 %v712, 1.442695
    %v737 = vpow.pop %v736
    %v738 = vmul.f32 %v713, 1.442695
    %v739 = vpow.pop %v738
    %v740 = vmul.f32 %v714, 1.442695
    %v741 = vpow.pop %v740
    %v742 = vmul.f32 %v715, 1.442695
    %v743 = vpow.pop %v742
    %v744 = vmul.f32 %v716, 1.442695
    %v745 = vpow.pop %v744
    %v746 = vmul.f32 %v717, 1.442695
    %v747 = vpow.pop %v746
    %v748 = vmul.f32 %v718, 1.442695
    %v749 = vpow.pop %v748
    %v750 = vmul.f32 %v719, 1.442695
    %v751 = vpow.pop %v750
    %752 = vadd.xlane.f32.xlu0 %v721
    %v753 = vpop.xlane.xlu0 %752
    %754 = vadd.xlane.f32.xlu0 %v723
    %v755 = vpop.xlane.xlu0 %754
    %756 = vadd.xlane.f32.xlu0 %v725
    %v757 = vpop.xlane.xlu0 %756
    %758 = vadd.xlane.f32.xlu0 %v727
    %v759 = vpop.xlane.xlu0 %758
    %760 = vadd.xlane.f32.xlu0 %v729
    %v761 = vpop.xlane.xlu0 %760
    %762 = vadd.xlane.f32.xlu0 %v731
    %v763 = vpop.xlane.xlu0 %762
    %764 = vadd.xlane.f32.xlu0 %v733
    %v765 = vpop.xlane.xlu0 %764
    %766 = vadd.xlane.f32.xlu0 %v735
    %v767 = vpop.xlane.xlu0 %766
    %768 = vadd.xlane.f32.xlu0 %v737
    %v769 = vpop.xlane.xlu0 %768
    %770 = vadd.xlane.f32.xlu0 %v739
    %v771 = vpop.xlane.xlu0 %770
    %772 = vadd.xlane.f32.xlu0 %v741
    %v773 = vpop.xlane.xlu0 %772
    %774 = vadd.xlane.f32.xlu0 %v743
    %v775 = vpop.xlane.xlu0 %774
    %776 = vadd.xlane.f32.xlu0 %v745
    %v777 = vpop.xlane.xlu0 %776
    %778 = vadd.xlane.f32.xlu0 %v747
    %v779 = vpop.xlane.xlu0 %778
    %780 = vadd.xlane.f32.xlu0 %v749
    %v781 = vpop.xlane.xlu0 %780
    %782 = vadd.xlane.f32.xlu0 %v751
    %v783 = vpop.xlane.xlu0 %782
    %v784 = vrcp.pop %v753
    %v785 = vrcp.pop %v755
    %v786 = vrcp.pop %v757
    %v787 = vrcp.pop %v759
    %v788 = vrcp.pop %v761
    %v789 = vrcp.pop %v763
    %v790 = vrcp.pop %v765
    %v791 = vrcp.pop %v767
    %v792 = vrcp.pop %v769
    %v793 = vrcp.pop %v771
    %v794 = vrcp.pop %v773
    %v795 = vrcp.pop %v775
    %v796 = vrcp.pop %v777
    %v797 = vrcp.pop %v779
    %v798 = vrcp.pop %v781
    %v799 = vrcp.pop %v783
    %v800 = vmul.f32 %v721, %v784
    %v801 = vmul.f32 %v723, %v785
    %v802 = vmul.f32 %v725, %v786
    %v803 = vmul.f32 %v727, %v787
    %v804 = vmul.f32 %v729, %v788
    %v805 = vmul.f32 %v731, %v789
    %v806 = vmul.f32 %v733, %v790
    %v807 = vmul.f32 %v735, %v791
    %v808 = vmul.f32 %v737, %v792
    %v809 = vmul.f32 %v739, %v793
    %v810 = vmul.f32 %v741, %v794
    %v811 = vmul.f32 %v743, %v795
    %v812 = vmul.f32 %v745, %v796
    %v813 = vmul.f32 %v747, %v797
    %v814 = vmul.f32 %v749, %v798
    %v815 = vmul.f32 %v751, %v799
    %816 = vmax.xlane.f32.xlu0 %v633
    %v817 = vpop.xlane.xlu0 %816
    %818 = vmax.xlane.f32.xlu0 %v635
    %v819 = vpop.xlane.xlu0 %818
    %820 = vmax.xlane.f32.xlu0 %v638
    %v821 = vpop.xlane.xlu0 %820
    %822 = vmax.xlane.f32.xlu0 %v640
    %v823 = vpop.xlane.xlu0 %822
    %824 = vmax.xlane.f32.xlu0 %v643
    %v825 = vpop.xlane.xlu0 %824
    %826 = vmax.xlane.f32.xlu0 %v645
    %v827 = vpop.xlane.xlu0 %826
    %828 = vmax.xlane.f32.xlu0 %v648
    %v829 = vpop.xlane.xlu0 %828
    %830 = vmax.xlane.f32.xlu0 %v650
    %v831 = vpop.xlane.xlu0 %830
    %832 = vmax.xlane.f32.xlu0 %v653
    %v833 = vpop.xlane.xlu0 %832
    %834 = vmax.xlane.f32.xlu0 %v655
    %v835 = vpop.xlane.xlu0 %834
    %836 = vmax.xlane.f32.xlu0 %v658
    %v837 = vpop.xlane.xlu0 %836
    %838 = vmax.xlane.f32.xlu0 %v660
    %v839 = vpop.xlane.xlu0 %838
    %840 = vmax.xlane.f32.xlu0 %v663
    %v841 = vpop.xlane.xlu0 %840
    %842 = vmax.xlane.f32.xlu0 %v665
    %v843 = vpop.xlane.xlu0 %842
    %844 = vmax.xlane.f32.xlu0 %v668
    %v845 = vpop.xlane.xlu0 %844
    %846 = vmax.xlane.f32.xlu0 %v670
    %v847 = vpop.xlane.xlu0 %846
    %v848 = vsub.f32 %v633, %v817
    %v849 = vsub.f32 %v635, %v819
    %v850 = vsub.f32 %v638, %v821
    %v851 = vsub.f32 %v640, %v823
    %v852 = vsub.f32 %v643, %v825
    %v853 = vsub.f32 %v645, %v827
    %v854 = vsub.f32 %v648, %v829
    %v855 = vsub.f32 %v650, %v831
    %v856 = vsub.f32 %v653, %v833
    %v857 = vsub.f32 %v655, %v835
    %v858 = vsub.f32 %v658, %v837
    %v859 = vsub.f32 %v660, %v839
    %v860 = vsub.f32 %v663, %v841
    %v861 = vsub.f32 %v665, %v843
    %v862 = vsub.f32 %v668, %v845
    %v863 = vsub.f32 %v670, %v847
    %v864 = vmul.f32 %v848, 1.442695
    %v865 = vpow.pop %v864
    %v866 = vmul.f32 %v849, 1.442695
    %v867 = vpow.pop %v866
    %v868 = vmul.f32 %v850, 1.442695
    %v869 = vpow.pop %v868
    %v870 = vmul.f32 %v851, 1.442695
    %v871 = vpow.pop %v870
    %v872 = vmul.f32 %v852, 1.442695
    %v873 = vpow.pop %v872
    %v874 = vmul.f32 %v853, 1.442695
    %v875 = vpow.pop %v874
    %v876 = vmul.f32 %v854, 1.442695
    %v877 = vpow.pop %v876
    %v878 = vmul.f32 %v855, 1.442695
    %v879 = vpow.pop %v878
    %v880 = vmul.f32 %v856, 1.442695
    %v881 = vpow.pop %v880
    %v882 = vmul.f32 %v857, 1.442695
    %v883 = vpow.pop %v882
    %v884 = vmul.f32 %v858, 1.442695
    %v885 = vpow.pop %v884
    %v886 = vmul.f32 %v859, 1.442695
    %v887 = vpow.pop %v886
    %v888 = vmul.f32 %v860, 1.442695
    %v889 = vpow.pop %v888
    %v890 = vmul.f32 %v861, 1.442695
    %v891 = vpow.pop %v890
    %v892 = vmul.f32 %v862, 1.442695
    %v893 = vpow.pop %v892
    %v894 = vmul.f32 %v863, 1.442695
    %v895 = vpow.pop %v894
    %896 = vadd.xlane.f32.xlu0 %v865
    %v897 = vpop.xlane.xlu0 %896
    %898 = vadd.xlane.f32.xlu0 %v867
    %v899 = vpop.xlane.xlu0 %898
    %900 = vadd.xlane.f32.xlu0 %v869
    %v901 = vpop.xlane.xlu0 %900
    %902 = vadd.xlane.f32.xlu0 %v871
    %v903 = vpop.xlane.xlu0 %902
    %904 = vadd.xlane.f32.xlu0 %v873
    %v905 = vpop.xlane.xlu0 %904
    %906 = vadd.xlane.f32.xlu0 %v875
    %v907 = vpop.xlane.xlu0 %906
    %908 = vadd.xlane.f32.xlu0 %v877
    %v909 = vpop.xlane.xlu0 %908
    %910 = vadd.xlane.f32.xlu0 %v879
    %v911 = vpop.xlane.xlu0 %910
    %912 = vadd.xlane.f32.xlu0 %v881
    %v913 = vpop.xlane.xlu0 %912
    %914 = vadd.xlane.f32.xlu0 %v883
    %v915 = vpop.xlane.xlu0 %914
    %916 = vadd.xlane.f32.xlu0 %v885
    %v917 = vpop.xlane.xlu0 %916
    %918 = vadd.xlane.f32.xlu0 %v887
    %v919 = vpop.xlane.xlu0 %918
    %920 = vadd.xlane.f32.xlu0 %v889
    %v921 = vpop.xlane.xlu0 %920
    %922 = vadd.xlane.f32.xlu0 %v891
    %v923 = vpop.xlane.xlu0 %922
    %924 = vadd.xlane.f32.xlu0 %v893
    %v925 = vpop.xlane.xlu0 %924
    %926 = vadd.xlane.f32.xlu0 %v895
    %v927 = vpop.xlane.xlu0 %926
    %v928 = vrcp.pop %v897
    %v929 = vrcp.pop %v899
    %v930 = vrcp.pop %v901
    %v931 = vrcp.pop %v903
    %v932 = vrcp.pop %v905
    %v933 = vrcp.pop %v907
    %v934 = vrcp.pop %v909
    %v935 = vrcp.pop %v911
    %v936 = vrcp.pop %v913
    %v937 = vrcp.pop %v915
    %v938 = vrcp.pop %v917
    %v939 = vrcp.pop %v919
    %v940 = vrcp.pop %v921
    %v941 = vrcp.pop %v923
    %v942 = vrcp.pop %v925
    %v943 = vrcp.pop %v927
    %v944 = vmul.f32 %v865, %v928
    %v945 = vmul.f32 %v867, %v929
    %v946 = vmul.f32 %v869, %v930
    %v947 = vmul.f32 %v871, %v931
    %v948 = vmul.f32 %v873, %v932
    %v949 = vmul.f32 %v875, %v933
    %v950 = vmul.f32 %v877, %v934
    %v951 = vmul.f32 %v879, %v935
    %v952 = vmul.f32 %v881, %v936
    %v953 = vmul.f32 %v883, %v937
    %v954 = vmul.f32 %v885, %v938
    %v955 = vmul.f32 %v887, %v939
    %v956 = vmul.f32 %v889, %v940
    %v957 = vmul.f32 %v891, %v941
    %v958 = vmul.f32 %v893, %v942
    %v959 = vmul.f32 %v895, %v943
    %v960 = vpack.c.bf16 %v801, %v800
    %v961 = vpack.c.bf16 %v803, %v802
    %v962 = vpack.c.bf16 %v805, %v804
    %v963 = vpack.c.bf16 %v807, %v806
    %v964 = vpack.c.bf16 %v809, %v808
    %v965 = vpack.c.bf16 %v811, %v810
    %v966 = vpack.c.bf16 %v813, %v812
    %v967 = vpack.c.bf16 %v815, %v814
    %v968 = vpack.c.bf16 %v945, %v944
    %v969 = vpack.c.bf16 %v947, %v946
    %v970 = vpack.c.bf16 %v949, %v948
    %v971 = vpack.c.bf16 %v951, %v950
    %v972 = vpack.c.bf16 %v953, %v952
    %v973 = vpack.c.bf16 %v955, %v954
    %v974 = vpack.c.bf16 %v957, %v956
    %v975 = vpack.c.bf16 %v959, %v958
    %v992 = vunpack.c.l.b16 %v445
    %v993 = vunpack.c.l.b16 %v446
    %v994 = vunpack.c.l.b16 %v447
    %v995 = vunpack.c.l.b16 %v448
    %v996 = vunpack.c.l.b16 %v449
    %v997 = vunpack.c.l.b16 %v450
    %v998 = vunpack.c.l.b16 %v451
    %v999 = vunpack.c.l.b16 %v452
    %v1000 = vunpack.c.l.b16 %v453
    %v1001 = vunpack.c.l.b16 %v454
    %v1002 = vunpack.c.l.b16 %v455
    %v1003 = vunpack.c.l.b16 %v456
    %v1004 = vunpack.c.l.b16 %v457
    %v1005 = vunpack.c.l.b16 %v458
    %v1006 = vunpack.c.l.b16 %v459
    %v1007 = vunpack.c.l.b16 %v460
    %v1008 = vpack.c.b16 %v993, %v992
    %v1009 = vpack.c.b16 %v995, %v994
    %v1010 = vpack.c.b16 %v997, %v996
    %v1011 = vpack.c.b16 %v999, %v998
    %v1012 = vpack.c.b16 %v1001, %v1000
    %v1013 = vpack.c.b16 %v1003, %v1002
    %v1014 = vpack.c.b16 %v1005, %v1004
    %v1015 = vpack.c.b16 %v1007, %v1006
    %1024 = vmatpush.bf16.msra.mxu0 %v1015
    %1025 = vmatpush.bf16.msra.mxu0 %v1014
    %1026 = vmatpush.bf16.msra.mxu0 %v1013
    %1027 = vmatpush.bf16.msra.mxu0 %v1012
    %1028 = vmatpush.bf16.msra.mxu0 %v1011
    %1029 = vmatpush.bf16.msra.mxu0 %v1010
    %1030 = vmatpush.bf16.msra.mxu0 %v1009
    %1031 = vmatpush.bf16.msra.mxu0 %v1008
    %1032 = vmatmul.bf16.gmra.mxu0 %v960
    %v1033 = vpop.f32.mrf.mxu0
    %v1034 = vadd.f32 0.0, %v1033
    %v1035 = vpop.f32.mrf.mxu0
    %v1036 = vadd.f32 0.0, %v1035
    %1037 = vmatmul.bf16.gmra.mxu0 %v961
    %v1038 = vpop.f32.mrf.mxu0
    %v1039 = vadd.f32 0.0, %v1038
    %v1040 = vpop.f32.mrf.mxu0
    %v1041 = vadd.f32 0.0, %v1040
    %1042 = vmatmul.bf16.gmra.mxu0 %v962
    %v1043 = vpop.f32.mrf.mxu0
    %v1044 = vadd.f32 0.0, %v1043
    %v1045 = vpop.f32.mrf.mxu0
    %v1046 = vadd.f32 0.0, %v1045
    %1047 = vmatmul.bf16.gmra.mxu0 %v963
    %v1048 = vpop.f32.mrf.mxu0
    %v1049 = vadd.f32 0.0, %v1048
    %v1050 = vpop.f32.mrf.mxu0
    %v1051 = vadd.f32 0.0, %v1050
    %1052 = vmatmul.bf16.gmra.mxu0 %v964
    %v1053 = vpop.f32.mrf.mxu0
    %v1054 = vadd.f32 0.0, %v1053
    %v1055 = vpop.f32.mrf.mxu0
    %v1056 = vadd.f32 0.0, %v1055
    %1057 = vmatmul.bf16.gmra.mxu0 %v965
    %v1058 = vpop.f32.mrf.mxu0
    %v1059 = vadd.f32 0.0, %v1058
    %v1060 = vpop.f32.mrf.mxu0
    %v1061 = vadd.f32 0.0, %v1060
    %1062 = vmatmul.bf16.gmra.mxu0 %v966
    %v1063 = vpop.f32.mrf.mxu0
    %v1064 = vadd.f32 0.0, %v1063
    %v1065 = vpop.f32.mrf.mxu0
    %v1066 = vadd.f32 0.0, %v1065
    %1067 = vmatmul.bf16.gmra.mxu0 %v967
    %v1068 = vpop.f32.mrf.mxu0
    %v1069 = vadd.f32 0.0, %v1068
    %v1070 = vpop.f32.mrf.mxu0
    %v1071 = vadd.f32 0.0, %v1070
    %1072 = vmatmul.bf16.gmra.mxu0 %v968
    %v1073 = vpop.f32.mrf.mxu0
    %v1074 = vadd.f32 0.0, %v1073
    %v1075 = vpop.f32.mrf.mxu0
    %v1076 = vadd.f32 0.0, %v1075
    %1077 = vmatmul.bf16.gmra.mxu0 %v969
    %v1078 = vpop.f32.mrf.mxu0
    %v1079 = vadd.f32 0.0, %v1078
    %v1080 = vpop.f32.mrf.mxu0
    %v1081 = vadd.f32 0.0, %v1080
    %1082 = vmatmul.bf16.gmra.mxu0 %v970
    %v1083 = vpop.f32.mrf.mxu0
    %v1084 = vadd.f32 0.0, %v1083
    %v1085 = vpop.f32.mrf.mxu0
    %v1086 = vadd.f32 0.0, %v1085
    %1087 = vmatmul.bf16.gmra.mxu0 %v971
    %v1088 = vpop.f32.mrf.mxu0
    %v1089 = vadd.f32 0.0, %v1088
    %v1090 = vpop.f32.mrf.mxu0
    %v1091 = vadd.f32 0.0, %v1090
    %1092 = vmatmul.bf16.gmra.mxu0 %v972
    %v1093 = vpop.f32.mrf.mxu0
    %v1094 = vadd.f32 0.0, %v1093
    %v1095 = vpop.f32.mrf.mxu0
    %v1096 = vadd.f32 0.0, %v1095
    %1097 = vmatmul.bf16.gmra.mxu0 %v973
    %v1098 = vpop.f32.mrf.mxu0
    %v1099 = vadd.f32 0.0, %v1098
    %v1100 = vpop.f32.mrf.mxu0
    %v1101 = vadd.f32 0.0, %v1100
    %1102 = vmatmul.bf16.gmra.mxu0 %v974
    %v1103 = vpop.f32.mrf.mxu0
    %v1104 = vadd.f32 0.0, %v1103
    %v1105 = vpop.f32.mrf.mxu0
    %v1106 = vadd.f32 0.0, %v1105
    %1107 = vmatmul.bf16.gmra.mxu0 %v975
    %v1108 = vpop.f32.mrf.mxu0
    %v1109 = vadd.f32 0.0, %v1108
    %v1110 = vpop.f32.mrf.mxu0
    %v1111 = vadd.f32 0.0, %v1110
    %1112 = vdwg.mxu0
    %v1113 = vadd.f32 %v194, %v1034
    %v1114 = vadd.f32 %v195, %v1036
    %v1115 = vadd.f32 %v196, %v1039
    %v1116 = vadd.f32 %v197, %v1041
    %v1117 = vadd.f32 %v198, %v1044
    %v1118 = vadd.f32 %v199, %v1046
    %v1119 = vadd.f32 %v200, %v1049
    %v1120 = vadd.f32 %v201, %v1051
    %v1121 = vadd.f32 %v202, %v1054
    %v1122 = vadd.f32 %v203, %v1056
    %v1123 = vadd.f32 %v204, %v1059
    %v1124 = vadd.f32 %v205, %v1061
    %v1125 = vadd.f32 %v206, %v1064
    %v1126 = vadd.f32 %v207, %v1066
    %v1127 = vadd.f32 %v208, %v1069
    %v1128 = vadd.f32 %v209, %v1071
    %1129 = vst.msk [vmem:[#allocation14] sm:$0xff] %vm549, %v1113
    %1130 = vst.msk [vmem:[#allocation14 + $0x8] sm:$0xff] %vm549, %v1114
    %1131 = vst.msk [vmem:[#allocation14 + $0x10] sm:$0xff] %vm549, %v1115
    %1132 = vst.msk [vmem:[#allocation14 + $0x18] sm:$0xff] %vm549, %v1116
    %1133 = vst.msk [vmem:[#allocation14 + $0x20] sm:$0xff] %vm549, %v1117
    %1134 = vst.msk [vmem:[#allocation14 + $0x28] sm:$0xff] %vm549, %v1118
    %1135 = vst.msk [vmem:[#allocation14 + $0x30] sm:$0xff] %vm549, %v1119
    %1136 = vst.msk [vmem:[#allocation14 + $0x38] sm:$0xff] %vm549, %v1120
    %1137 = vst.msk [vmem:[#allocation14 + $0x40] sm:$0xff] %vm549, %v1121
    %1138 = vst.msk [vmem:[#allocation14 + $0x48] sm:$0xff] %vm549, %v1122
    %1139 = vst.msk [vmem:[#allocation14 + $0x50] sm:$0xff] %vm549, %v1123
    %1140 = vst.msk [vmem:[#allocation14 + $0x58] sm:$0xff] %vm549, %v1124
    %1141 = vst.msk [vmem:[#allocation14 + $0x60] sm:$0xff] %vm549, %v1125
    %1142 = vst.msk [vmem:[#allocation14 + $0x68] sm:$0xff] %vm549, %v1126
    %1143 = vst.msk [vmem:[#allocation14 + $0x70] sm:$0xff] %vm549, %v1127
    %1144 = vst.msk [vmem:[#allocation14 + $0x78] sm:$0xff] %vm549, %v1128
    %v1145 = vsub.f32 %v1074, %v1034
    %v1146 = vsub.f32 %v1076, %v1036
    %v1147 = vsub.f32 %v1079, %v1039
    %v1148 = vsub.f32 %v1081, %v1041
    %v1149 = vsub.f32 %v1084, %v1044
    %v1150 = vsub.f32 %v1086, %v1046
    %v1151 = vsub.f32 %v1089, %v1049
    %v1152 = vsub.f32 %v1091, %v1051
    %v1153 = vsub.f32 %v1094, %v1054
    %v1154 = vsub.f32 %v1096, %v1056
    %v1155 = vsub.f32 %v1099, %v1059
    %v1156 = vsub.f32 %v1101, %v1061
    %v1157 = vsub.f32 %v1104, %v1064
    %v1158 = vsub.f32 %v1106, %v1066
    %v1159 = vsub.f32 %v1109, %v1069
    %v1160 = vsub.f32 %v1111, %v1071
    %v1161 = vadd.f32 %v1145, 12.0
    %v1162 = vadd.f32 %v1146, 12.0
    %v1163 = vadd.f32 %v1147, 12.0
    %v1164 = vadd.f32 %v1148, 12.0
    %v1165 = vadd.f32 %v1149, 12.0
    %v1166 = vadd.f32 %v1150, 12.0
    %v1167 = vadd.f32 %v1151, 12.0
    %v1168 = vadd.f32 %v1152, 12.0
    %v1169 = vadd.f32 %v1153, 12.0
    %v1170 = vadd.f32 %v1154, 12.0
    %v1171 = vadd.f32 %v1155, 12.0
    %v1172 = vadd.f32 %v1156, 12.0
    %v1173 = vadd.f32 %v1157, 12.0
    %v1174 = vadd.f32 %v1158, 12.0
    %v1175 = vadd.f32 %v1159, 12.0
    %v1176 = vadd.f32 %v1160, 12.0
    %v1177 = vmax.f32 %v1161, 0.0
    %v1178 = vmax.f32 %v1162, 0.0
    %v1179 = vmax.f32 %v1163, 0.0
    %v1180 = vmax.f32 %v1164, 0.0
    %v1181 = vmax.f32 %v1165, 0.0
    %v1182 = vmax.f32 %v1166, 0.0
    %v1183 = vmax.f32 %v1167, 0.0
    %v1184 = vmax.f32 %v1168, 0.0
    %v1185 = vmax.f32 %v1169, 0.0
    %v1186 = vmax.f32 %v1170, 0.0
    %v1187 = vmax.f32 %v1171, 0.0
    %v1188 = vmax.f32 %v1172, 0.0
    %v1189 = vmax.f32 %v1173, 0.0
    %v1190 = vmax.f32 %v1174, 0.0
    %v1191 = vmax.f32 %v1175, 0.0
    %v1192 = vmax.f32 %v1176, 0.0
    %v1193 = vadd.f32 %v1177, 0.0
    %v1194 = vadd.f32 %v1178, 0.0
    %v1195 = vadd.f32 %v1179, 0.0
    %v1196 = vadd.f32 %v1180, 0.0
    %v1197 = vadd.f32 %v1181, 0.0
    %v1198 = vadd.f32 %v1182, 0.0
    %v1199 = vadd.f32 %v1183, 0.0
    %v1200 = vadd.f32 %v1184, 0.0
    %v1201 = vadd.f32 %v1185, 0.0
    %v1202 = vadd.f32 %v1186, 0.0
    %v1203 = vadd.f32 %v1187, 0.0
    %v1204 = vadd.f32 %v1188, 0.0
    %v1205 = vadd.f32 %v1189, 0.0
    %v1206 = vadd.f32 %v1190, 0.0
    %v1207 = vadd.f32 %v1191, 0.0
    %v1208 = vadd.f32 %v1192, 0.0
    %1209 = vrot.lane.b32.xlu0 %v541, 64
    %v1210 = vpop.permute.xlu0 %1209
    %1211 = vrot.lane.b32.xlu0 %v542, 64
    %v1212 = vpop.permute.xlu0 %1211
    %1213 = vrot.lane.b32.xlu0 %v543, 64
    %v1214 = vpop.permute.xlu0 %1213
    %1215 = vrot.lane.b32.xlu0 %v544, 64
    %v1216 = vpop.permute.xlu0 %1215
    %1217 = vrot.lane.b32.xlu0 %v545, 64
    %v1218 = vpop.permute.xlu0 %1217
    %1219 = vrot.lane.b32.xlu0 %v546, 64
    %v1220 = vpop.permute.xlu0 %1219
    %1221 = vrot.lane.b32.xlu0 %v547, 64
    %v1222 = vpop.permute.xlu0 %1221
    %1223 = vrot.lane.b32.xlu0 %v548, 64
    %v1224 = vpop.permute.xlu0 %1223
    %v1226 = vsel %vm549, %v1210, 0
    %v1229 = vsel %vm549, %v1212, 0
    %v1232 = vsel %vm549, %v1214, 0
    %v1235 = vsel %vm549, %v1216, 0
    %v1238 = vsel %vm549, %v1218, 0
    %v1241 = vsel %vm549, %v1220, 0
    %v1244 = vsel %vm549, %v1222, 0
    %v1247 = vsel %vm549, %v1224, 0
    %1249 = vmatpush.bf16.msra.mxu0 0
    %1250 = vmatpush.bf16.msra.mxu0 0
    %1251 = vmatpush.bf16.msra.mxu0 0
    %1252 = vmatpush.bf16.msra.mxu0 0
    %1253 = vmatpush.bf16.msra.mxu0 %v504
    %1254 = vmatpush.bf16.msra.mxu0 %v503
    %1255 = vmatpush.bf16.msra.mxu0 %v502
    %1256 = vmatpush.bf16.msra.mxu0 %v501
    %1257 = vmatmul.bf16.gmra.mxu0 %v1226
    %v1258 = vpop.f32.mrf.mxu0
    %v1259 = vadd.f32 0.0, %v1258
    %v1260 = vpop.f32.mrf.mxu0
    %v1261 = vadd.f32 0.0, %v1260
    %1262 = vmatmul.bf16.gmra.mxu0 %v1229
    %v1263 = vpop.f32.mrf.mxu0
    %v1264 = vadd.f32 0.0, %v1263
    %v1265 = vpop.f32.mrf.mxu0
    %v1266 = vadd.f32 0.0, %v1265
    %1267 = vmatmul.bf16.gmra.mxu0 %v1232
    %v1268 = vpop.f32.mrf.mxu0
    %v1269 = vadd.f32 0.0, %v1268
    %v1270 = vpop.f32.mrf.mxu0
    %v1271 = vadd.f32 0.0, %v1270
    %1272 = vmatmul.bf16.gmra.mxu0 %v1235
    %v1273 = vpop.f32.mrf.mxu0
    %v1274 = vadd.f32 0.0, %v1273
    %v1275 = vpop.f32.mrf.mxu0
    %v1276 = vadd.f32 0.0, %v1275
    %1277 = vmatmul.bf16.gmra.mxu0 %v1238
    %v1278 = vpop.f32.mrf.mxu0
    %v1279 = vadd.f32 0.0, %v1278
    %v1280 = vpop.f32.mrf.mxu0
    %v1281 = vadd.f32 0.0, %v1280
    %1282 = vmatmul.bf16.gmra.mxu0 %v1241
    %v1283 = vpop.f32.mrf.mxu0
    %v1284 = vadd.f32 0.0, %v1283
    %v1285 = vpop.f32.mrf.mxu0
    %v1286 = vadd.f32 0.0, %v1285
    %1287 = vmatmul.bf16.gmra.mxu0 %v1244
    %v1288 = vpop.f32.mrf.mxu0
    %v1289 = vadd.f32 0.0, %v1288
    %v1290 = vpop.f32.mrf.mxu0
    %v1291 = vadd.f32 0.0, %v1290
    %1292 = vmatmul.bf16.gmra.mxu0 %v1247
    %v1293 = vpop.f32.mrf.mxu0
    %v1294 = vadd.f32 0.0, %v1293
    %v1295 = vpop.f32.mrf.mxu0
    %v1296 = vadd.f32 0.0, %v1295
    %1297 = vdwg.mxu0
    %1298 = vmatpush.bf16.msra.mxu0 0
    %1299 = vmatpush.bf16.msra.mxu0 0
    %1300 = vmatpush.bf16.msra.mxu0 0
    %1301 = vmatpush.bf16.msra.mxu0 0
    %1302 = vmatpush.bf16.msra.mxu0 %v480
    %1303 = vmatpush.bf16.msra.mxu0 %v479
    %1304 = vmatpush.bf16.msra.mxu0 %v478
    %1305 = vmatpush.bf16.msra.mxu0 %v477
    %1306 = vmatmul.bf16.gmra.mxu0 %v1226
    %v1307 = vpop.f32.mrf.mxu0
    %v1308 = vadd.f32 0.0, %v1307
    %v1309 = vpop.f32.mrf.mxu0
    %v1310 = vadd.f32 0.0, %v1309
    %1311 = vmatmul.bf16.gmra.mxu0 %v1229
    %v1312 = vpop.f32.mrf.mxu0
    %v1313 = vadd.f32 0.0, %v1312
    %v1314 = vpop.f32.mrf.mxu0
    %v1315 = vadd.f32 0.0, %v1314
    %1316 = vmatmul.bf16.gmra.mxu0 %v1232
    %v1317 = vpop.f32.mrf.mxu0
    %v1318 = vadd.f32 0.0, %v1317
    %v1319 = vpop.f32.mrf.mxu0
    %v1320 = vadd.f32 0.0, %v1319
    %1321 = vmatmul.bf16.gmra.mxu0 %v1235
    %v1322 = vpop.f32.mrf.mxu0
    %v1323 = vadd.f32 0.0, %v1322
    %v1324 = vpop.f32.mrf.mxu0
    %v1325 = vadd.f32 0.0, %v1324
    %1326 = vmatmul.bf16.gmra.mxu0 %v1238
    %v1327 = vpop.f32.mrf.mxu0
    %v1328 = vadd.f32 0.0, %v1327
    %v1329 = vpop.f32.mrf.mxu0
    %v1330 = vadd.f32 0.0, %v1329
    %1331 = vmatmul.bf16.gmra.mxu0 %v1241
    %v1332 = vpop.f32.mrf.mxu0
    %v1333 = vadd.f32 0.0, %v1332
    %v1334 = vpop.f32.mrf.mxu0
    %v1335 = vadd.f32 0.0, %v1334
    %1336 = vmatmul.bf16.gmra.mxu0 %v1244
    %v1337 = vpop.f32.mrf.mxu0
    %v1338 = vadd.f32 0.0, %v1337
    %v1339 = vpop.f32.mrf.mxu0
    %v1340 = vadd.f32 0.0, %v1339
    %1341 = vmatmul.bf16.gmra.mxu0 %v1247
    %v1342 = vpop.f32.mrf.mxu0
    %v1343 = vadd.f32 0.0, %v1342
    %v1344 = vpop.f32.mrf.mxu0
    %v1345 = vadd.f32 0.0, %v1344
    %1346 = vdwg.mxu0
    %1347 = vmax.xlane.f32.xlu0 %v1259
    %v1348 = vpop.xlane.xlu0 %1347
    %1349 = vmax.xlane.f32.xlu0 %v1261
    %v1350 = vpop.xlane.xlu0 %1349
    %1351 = vmax.xlane.f32.xlu0 %v1264
    %v1352 = vpop.xlane.xlu0 %1351
    %1353 = vmax.xlane.f32.xlu0 %v1266
    %v1354 = vpop.xlane.xlu0 %1353
    %1355 = vmax.xlane.f32.xlu0 %v1269
    %v1356 = vpop.xlane.xlu0 %1355
    %1357 = vmax.xlane.f32.xlu0 %v1271
    %v1358 = vpop.xlane.xlu0 %1357
    %1359 = vmax.xlane.f32.xlu0 %v1274
    %v1360 = vpop.xlane.xlu0 %1359
    %1361 = vmax.xlane.f32.xlu0 %v1276
    %v1362 = vpop.xlane.xlu0 %1361
    %1363 = vmax.xlane.f32.xlu0 %v1279
    %v1364 = vpop.xlane.xlu0 %1363
    %1365 = vmax.xlane.f32.xlu0 %v1281
    %v1366 = vpop.xlane.xlu0 %1365
    %1367 = vmax.xlane.f32.xlu0 %v1284
    %v1368 = vpop.xlane.xlu0 %1367
    %1369 = vmax.xlane.f32.xlu0 %v1286
    %v1370 = vpop.xlane.xlu0 %1369
    %1371 = vmax.xlane.f32.xlu0 %v1289
    %v1372 = vpop.xlane.xlu0 %1371
    %1373 = vmax.xlane.f32.xlu0 %v1291
    %v1374 = vpop.xlane.xlu0 %1373
    %1375 = vmax.xlane.f32.xlu0 %v1294
    %v1376 = vpop.xlane.xlu0 %1375
    %1377 = vmax.xlane.f32.xlu0 %v1296
    %v1378 = vpop.xlane.xlu0 %1377
    %v1379 = vsub.f32 %v1259, %v1348
    %v1380 = vsub.f32 %v1261, %v1350
    %v1381 = vsub.f32 %v1264, %v1352
    %v1382 = vsub.f32 %v1266, %v1354
    %v1383 = vsub.f32 %v1269, %v1356
    %v1384 = vsub.f32 %v1271, %v1358
    %v1385 = vsub.f32 %v1274, %v1360
    %v1386 = vsub.f32 %v1276, %v1362
    %v1387 = vsub.f32 %v1279, %v1364
    %v1388 = vsub.f32 %v1281, %v1366
    %v1389 = vsub.f32 %v1284, %v1368
    %v1390 = vsub.f32 %v1286, %v1370
    %v1391 = vsub.f32 %v1289, %v1372
    %v1392 = vsub.f32 %v1291, %v1374
    %v1393 = vsub.f32 %v1294, %v1376
    %v1394 = vsub.f32 %v1296, %v1378
    %v1395 = vmul.f32 %v1379, 1.442695
    %v1396 = vpow.pop %v1395
    %v1397 = vmul.f32 %v1380, 1.442695
    %v1398 = vpow.pop %v1397
    %v1399 = vmul.f32 %v1381, 1.442695
    %v1400 = vpow.pop %v1399
    %v1401 = vmul.f32 %v1382, 1.442695
    %v1402 = vpow.pop %v1401
    %v1403 = vmul.f32 %v1383, 1.442695
    %v1404 = vpow.pop %v1403
    %v1405 = vmul.f32 %v1384, 1.442695
    %v1406 = vpow.pop %v1405
    %v1407 = vmul.f32 %v1385, 1.442695
    %v1408 = vpow.pop %v1407
    %v1409 = vmul.f32 %v1386, 1.442695
    %v1410 = vpow.pop %v1409
    %v1411 = vmul.f32 %v1387, 1.442695
    %v1412 = vpow.pop %v1411
    %v1413 = vmul.f32 %v1388, 1.442695
    %v1414 = vpow.pop %v1413
    %v1415 = vmul.f32 %v1389, 1.442695
    %v1416 = vpow.pop %v1415
    %v1417 = vmul.f32 %v1390, 1.442695
    %v1418 = vpow.pop %v1417
    %v1419 = vmul.f32 %v1391, 1.442695
    %v1420 = vpow.pop %v1419
    %v1421 = vmul.f32 %v1392, 1.442695
    %v1422 = vpow.pop %v1421
    %v1423 = vmul.f32 %v1393, 1.442695
    %v1424 = vpow.pop %v1423
    %v1425 = vmul.f32 %v1394, 1.442695
    %v1426 = vpow.pop %v1425
    %1427 = vadd.xlane.f32.xlu0 %v1396
    %v1428 = vpop.xlane.xlu0 %1427
    %1429 = vadd.xlane.f32.xlu0 %v1398
    %v1430 = vpop.xlane.xlu0 %1429
    %1431 = vadd.xlane.f32.xlu0 %v1400
    %v1432 = vpop.xlane.xlu0 %1431
    %1433 = vadd.xlane.f32.xlu0 %v1402
    %v1434 = vpop.xlane.xlu0 %1433
    %1435 = vadd.xlane.f32.xlu0 %v1404
    %v1436 = vpop.xlane.xlu0 %1435
    %1437 = vadd.xlane.f32.xlu0 %v1406
    %v1438 = vpop.xlane.xlu0 %1437
    %1439 = vadd.xlane.f32.xlu0 %v1408
    %v1440 = vpop.xlane.xlu0 %1439
    %1441 = vadd.xlane.f32.xlu0 %v1410
    %v1442 = vpop.xlane.xlu0 %1441
    %1443 = vadd.xlane.f32.xlu0 %v1412
    %v1444 = vpop.xlane.xlu0 %1443
    %1445 = vadd.xlane.f32.xlu0 %v1414
    %v1446 = vpop.xlane.xlu0 %1445
    %1447 = vadd.xlane.f32.xlu0 %v1416
    %v1448 = vpop.xlane.xlu0 %1447
    %1449 = vadd.xlane.f32.xlu0 %v1418
    %v1450 = vpop.xlane.xlu0 %1449
    %1451 = vadd.xlane.f32.xlu0 %v1420
    %v1452 = vpop.xlane.xlu0 %1451
    %1453 = vadd.xlane.f32.xlu0 %v1422
    %v1454 = vpop.xlane.xlu0 %1453
    %1455 = vadd.xlane.f32.xlu0 %v1424
    %v1456 = vpop.xlane.xlu0 %1455
    %1457 = vadd.xlane.f32.xlu0 %v1426
    %v1458 = vpop.xlane.xlu0 %1457
    %v1459 = vrcp.pop %v1428
    %v1460 = vrcp.pop %v1430
    %v1461 = vrcp.pop %v1432
    %v1462 = vrcp.pop %v1434
    %v1463 = vrcp.pop %v1436
    %v1464 = vrcp.pop %v1438
    %v1465 = vrcp.pop %v1440
    %v1466 = vrcp.pop %v1442
    %v1467 = vrcp.pop %v1444
    %v1468 = vrcp.pop %v1446
    %v1469 = vrcp.pop %v1448
    %v1470 = vrcp.pop %v1450
    %v1471 = vrcp.pop %v1452
    %v1472 = vrcp.pop %v1454
    %v1473 = vrcp.pop %v1456
    %v1474 = vrcp.pop %v1458
    %v1475 = vmul.f32 %v1396, %v1459
    %v1476 = vmul.f32 %v1398, %v1460
    %v1477 = vmul.f32 %v1400, %v1461
    %v1478 = vmul.f32 %v1402, %v1462
    %v1479 = vmul.f32 %v1404, %v1463
    %v1480 = vmul.f32 %v1406, %v1464
    %v1481 = vmul.f32 %v1408, %v1465
    %v1482 = vmul.f32 %v1410, %v1466
    %v1483 = vmul.f32 %v1412, %v1467
    %v1484 = vmul.f32 %v1414, %v1468
    %v1485 = vmul.f32 %v1416, %v1469
    %v1486 = vmul.f32 %v1418, %v1470
    %v1487 = vmul.f32 %v1420, %v1471
    %v1488 = vmul.f32 %v1422, %v1472
    %v1489 = vmul.f32 %v1424, %v1473
    %v1490 = vmul.f32 %v1426, %v1474
    %1491 = vmax.xlane.f32.xlu0 %v1308
    %v1492 = vpop.xlane.xlu0 %1491
    %1493 = vmax.xlane.f32.xlu0 %v1310
    %v1494 = vpop.xlane.xlu0 %1493
    %1495 = vmax.xlane.f32.xlu0 %v1313
    %v1496 = vpop.xlane.xlu0 %1495
    %1497 = vmax.xlane.f32.xlu0 %v1315
    %v1498 = vpop.xlane.xlu0 %1497
    %1499 = vmax.xlane.f32.xlu0 %v1318
    %v1500 = vpop.xlane.xlu0 %1499
    %1501 = vmax.xlane.f32.xlu0 %v1320
    %v1502 = vpop.xlane.xlu0 %1501
    %1503 = vmax.xlane.f32.xlu0 %v1323
    %v1504 = vpop.xlane.xlu0 %1503
    %1505 = vmax.xlane.f32.xlu0 %v1325
    %v1506 = vpop.xlane.xlu0 %1505
    %1507 = vmax.xlane.f32.xlu0 %v1328
    %v1508 = vpop.xlane.xlu0 %1507
    %1509 = vmax.xlane.f32.xlu0 %v1330
    %v1510 = vpop.xlane.xlu0 %1509
    %1511 = vmax.xlane.f32.xlu0 %v1333
    %v1512 = vpop.xlane.xlu0 %1511
    %1513 = vmax.xlane.f32.xlu0 %v1335
    %v1514 = vpop.xlane.xlu0 %1513
    %1515 = vmax.xlane.f32.xlu0 %v1338
    %v1516 = vpop.xlane.xlu0 %1515
    %1517 = vmax.xlane.f32.xlu0 %v1340
    %v1518 = vpop.xlane.xlu0 %1517
    %1519 = vmax.xlane.f32.xlu0 %v1343
    %v1520 = vpop.xlane.xlu0 %1519
    %1521 = vmax.xlane.f32.xlu0 %v1345
    %v1522 = vpop.xlane.xlu0 %1521
    %v1523 = vsub.f32 %v1308, %v1492
    %v1524 = vsub.f32 %v1310, %v1494
    %v1525 = vsub.f32 %v1313, %v1496
    %v1526 = vsub.f32 %v1315, %v1498
    %v1527 = vsub.f32 %v1318, %v1500
    %v1528 = vsub.f32 %v1320, %v1502
    %v1529 = vsub.f32 %v1323, %v1504
    %v1530 = vsub.f32 %v1325, %v1506
    %v1531 = vsub.f32 %v1328, %v1508
    %v1532 = vsub.f32 %v1330, %v1510
    %v1533 = vsub.f32 %v1333, %v1512
    %v1534 = vsub.f32 %v1335, %v1514
    %v1535 = vsub.f32 %v1338, %v1516
    %v1536 = vsub.f32 %v1340, %v1518
    %v1537 = vsub.f32 %v1343, %v1520
    %v1538 = vsub.f32 %v1345, %v1522
    %v1539 = vmul.f32 %v1523, 1.442695
    %v1540 = vpow.pop %v1539
    %v1541 = vmul.f32 %v1524, 1.442695
    %v1542 = vpow.pop %v1541
    %v1543 = vmul.f32 %v1525, 1.442695
    %v1544 = vpow.pop %v1543
    %v1545 = vmul.f32 %v1526, 1.442695
    %v1546 = vpow.pop %v1545
    %v1547 = vmul.f32 %v1527, 1.442695
    %v1548 = vpow.pop %v1547
    %v1549 = vmul.f32 %v1528, 1.442695
    %v1550 = vpow.pop %v1549
    %v1551 = vmul.f32 %v1529, 1.442695
    %v1552 = vpow.pop %v1551
    %v1553 = vmul.f32 %v1530, 1.442695
    %v1554 = vpow.pop %v1553
    %v1555 = vmul.f32 %v1531, 1.442695
    %v1556 = vpow.pop %v1555
    %v1557 = vmul.f32 %v1532, 1.442695
    %v1558 = vpow.pop %v1557
    %v1559 = vmul.f32 %v1533, 1.442695
    %v1560 = vpow.pop %v1559
    %v1561 = vmul.f32 %v1534, 1.442695
    %v1562 = vpow.pop %v1561
    %v1563 = vmul.f32 %v1535, 1.442695
    %v1564 = vpow.pop %v1563
    %v1565 = vmul.f32 %v1536, 1.442695
    %v1566 = vpow.pop %v1565
    %v1567 = vmul.f32 %v1537, 1.442695
    %v1568 = vpow.pop %v1567
    %v1569 = vmul.f32 %v1538, 1.442695
    %v1570 = vpow.pop %v1569
    %1571 = vadd.xlane.f32.xlu0 %v1540
    %v1572 = vpop.xlane.xlu0 %1571
    %1573 = vadd.xlane.f32.xlu0 %v1542
    %v1574 = vpop.xlane.xlu0 %1573
    %1575 = vadd.xlane.f32.xlu0 %v1544
    %v1576 = vpop.xlane.xlu0 %1575
    %1577 = vadd.xlane.f32.xlu0 %v1546
    %v1578 = vpop.xlane.xlu0 %1577
    %1579 = vadd.xlane.f32.xlu0 %v1548
    %v1580 = vpop.xlane.xlu0 %1579
    %1581 = vadd.xlane.f32.xlu0 %v1550
    %v1582 = vpop.xlane.xlu0 %1581
    %1583 = vadd.xlane.f32.xlu0 %v1552
    %v1584 = vpop.xlane.xlu0 %1583
    %1585 = vadd.xlane.f32.xlu0 %v1554
    %v1586 = vpop.xlane.xlu0 %1585
    %1587 = vadd.xlane.f32.xlu0 %v1556
    %v1588 = vpop.xlane.xlu0 %1587
    %1589 = vadd.xlane.f32.xlu0 %v1558
    %v1590 = vpop.xlane.xlu0 %1589
    %1591 = vadd.xlane.f32.xlu0 %v1560
    %v1592 = vpop.xlane.xlu0 %1591
    %1593 = vadd.xlane.f32.xlu0 %v1562
    %v1594 = vpop.xlane.xlu0 %1593
    %1595 = vadd.xlane.f32.xlu0 %v1564
    %v1596 = vpop.xlane.xlu0 %1595
    %1597 = vadd.xlane.f32.xlu0 %v1566
    %v1598 = vpop.xlane.xlu0 %1597
    %1599 = vadd.xlane.f32.xlu0 %v1568
    %v1600 = vpop.xlane.xlu0 %1599
    %1601 = vadd.xlane.f32.xlu0 %v1570
    %v1602 = vpop.xlane.xlu0 %1601
    %v1603 = vrcp.pop %v1572
    %v1604 = vrcp.pop %v1574
    %v1605 = vrcp.pop %v1576
    %v1606 = vrcp.pop %v1578
    %v1607 = vrcp.pop %v1580
    %v1608 = vrcp.pop %v1582
    %v1609 = vrcp.pop %v1584
    %v1610 = vrcp.pop %v1586
    %v1611 = vrcp.pop %v1588
    %v1612 = vrcp.pop %v1590
    %v1613 = vrcp.pop %v1592
    %v1614 = vrcp.pop %v1594
    %v1615 = vrcp.pop %v1596
    %v1616 = vrcp.pop %v1598
    %v1617 = vrcp.pop %v1600
    %v1618 = vrcp.pop %v1602
    %v1619 = vmul.f32 %v1540, %v1603
    %v1620 = vmul.f32 %v1542, %v1604
    %v1621 = vmul.f32 %v1544, %v1605
    %v1622 = vmul.f32 %v1546, %v1606
    %v1623 = vmul.f32 %v1548, %v1607
    %v1624 = vmul.f32 %v1550, %v1608
    %v1625 = vmul.f32 %v1552, %v1609
    %v1626 = vmul.f32 %v1554, %v1610
    %v1627 = vmul.f32 %v1556, %v1611
    %v1628 = vmul.f32 %v1558, %v1612
    %v1629 = vmul.f32 %v1560, %v1613
    %v1630 = vmul.f32 %v1562, %v1614
    %v1631 = vmul.f32 %v1564, %v1615
    %v1632 = vmul.f32 %v1566, %v1616
    %v1633 = vmul.f32 %v1568, %v1617
    %v1634 = vmul.f32 %v1570, %v1618
    %v1635 = vpack.c.bf16 %v1476, %v1475
    %v1636 = vpack.c.bf16 %v1478, %v1477
    %v1637 = vpack.c.bf16 %v1480, %v1479
    %v1638 = vpack.c.bf16 %v1482, %v1481
    %v1639 = vpack.c.bf16 %v1484, %v1483
    %v1640 = vpack.c.bf16 %v1486, %v1485
    %v1641 = vpack.c.bf16 %v1488, %v1487
    %v1642 = vpack.c.bf16 %v1490, %v1489
    %v1643 = vpack.c.bf16 %v1620, %v1619
    %v1644 = vpack.c.bf16 %v1622, %v1621
    %v1645 = vpack.c.bf16 %v1624, %v1623
    %v1646 = vpack.c.bf16 %v1626, %v1625
    %v1647 = vpack.c.bf16 %v1628, %v1627
    %v1648 = vpack.c.bf16 %v1630, %v1629
    %v1649 = vpack.c.bf16 %v1632, %v1631
    %v1650 = vpack.c.bf16 %v1634, %v1633
    %1651 = vrot.lane.b32.xlu0 %v1008, 64
    %v1652 = vpop.permute.xlu0 %1651
    %1653 = vrot.lane.b32.xlu0 %v1009, 64
    %v1654 = vpop.permute.xlu0 %1653
    %1655 = vrot.lane.b32.xlu0 %v1010, 64
    %v1656 = vpop.permute.xlu0 %1655
    %1657 = vrot.lane.b32.xlu0 %v1011, 64
    %v1658 = vpop.permute.xlu0 %1657
    %1659 = vrot.lane.b32.xlu0 %v1012, 64
    %v1660 = vpop.permute.xlu0 %1659
    %1661 = vrot.lane.b32.xlu0 %v1013, 64
    %v1662 = vpop.permute.xlu0 %1661
    %1663 = vrot.lane.b32.xlu0 %v1014, 64
    %v1664 = vpop.permute.xlu0 %1663
    %1665 = vrot.lane.b32.xlu0 %v1015, 64
    %v1666 = vpop.permute.xlu0 %1665
    %1675 = vmatpush.bf16.msra.mxu0 %v1666
    %1676 = vmatpush.bf16.msra.mxu0 %v1664
    %1677 = vmatpush.bf16.msra.mxu0 %v1662
    %1678 = vmatpush.bf16.msra.mxu0 %v1660
    %1679 = vmatpush.bf16.msra.mxu0 %v1658
    %1680 = vmatpush.bf16.msra.mxu0 %v1656
    %1681 = vmatpush.bf16.msra.mxu0 %v1654
    %1682 = vmatpush.bf16.msra.mxu0 %v1652
    %1683 = vmatmul.bf16.gmra.mxu0 %v1635
    %v1684 = vpop.f32.mrf.mxu0
    %v1685 = vadd.f32 0.0, %v1684
    %v1686 = vpop.f32.mrf.mxu0
    %v1687 = vadd.f32 0.0, %v1686
    %1688 = vmatmul.bf16.gmra.mxu0 %v1636
    %v1689 = vpop.f32.mrf.mxu0
    %v1690 = vadd.f32 0.0, %v1689
    %v1691 = vpop.f32.mrf.mxu0
    %v1692 = vadd.f32 0.0, %v1691
    %1693 = vmatmul.bf16.gmra.mxu0 %v1637
    %v1694 = vpop.f32.mrf.mxu0
    %v1695 = vadd.f32 0.0, %v1694
    %v1696 = vpop.f32.mrf.mxu0
    %v1697 = vadd.f32 0.0, %v1696
    %1698 = vmatmul.bf16.gmra.mxu0 %v1638
    %v1699 = vpop.f32.mrf.mxu0
    %v1700 = vadd.f32 0.0, %v1699
    %v1701 = vpop.f32.mrf.mxu0
    %v1702 = vadd.f32 0.0, %v1701
    %1703 = vmatmul.bf16.gmra.mxu0 %v1639
    %v1704 = vpop.f32.mrf.mxu0
    %v1705 = vadd.f32 0.0, %v1704
    %v1706 = vpop.f32.mrf.mxu0
    %v1707 = vadd.f32 0.0, %v1706
    %1708 = vmatmul.bf16.gmra.mxu0 %v1640
    %v1709 = vpop.f32.mrf.mxu0
    %v1710 = vadd.f32 0.0, %v1709
    %v1711 = vpop.f32.mrf.mxu0
    %v1712 = vadd.f32 0.0, %v1711
    %1713 = vmatmul.bf16.gmra.mxu0 %v1641
    %v1714 = vpop.f32.mrf.mxu0
    %v1715 = vadd.f32 0.0, %v1714
    %v1716 = vpop.f32.mrf.mxu0
    %v1717 = vadd.f32 0.0, %v1716
    %1718 = vmatmul.bf16.gmra.mxu0 %v1642
    %v1719 = vpop.f32.mrf.mxu0
    %v1720 = vadd.f32 0.0, %v1719
    %v1721 = vpop.f32.mrf.mxu0
    %v1722 = vadd.f32 0.0, %v1721
    %1723 = vmatmul.bf16.gmra.mxu0 %v1643
    %v1724 = vpop.f32.mrf.mxu0
    %v1725 = vadd.f32 0.0, %v1724
    %v1726 = vpop.f32.mrf.mxu0
    %v1727 = vadd.f32 0.0, %v1726
    %1728 = vmatmul.bf16.gmra.mxu0 %v1644
    %v1729 = vpop.f32.mrf.mxu0
    %v1730 = vadd.f32 0.0, %v1729
    %v1731 = vpop.f32.mrf.mxu0
    %v1732 = vadd.f32 0.0, %v1731
    %1733 = vmatmul.bf16.gmra.mxu0 %v1645
    %v1734 = vpop.f32.mrf.mxu0
    %v1735 = vadd.f32 0.0, %v1734
    %v1736 = vpop.f32.mrf.mxu0
    %v1737 = vadd.f32 0.0, %v1736
    %1738 = vmatmul.bf16.gmra.mxu0 %v1646
    %v1739 = vpop.f32.mrf.mxu0
    %v1740 = vadd.f32 0.0, %v1739
    %v1741 = vpop.f32.mrf.mxu0
    %v1742 = vadd.f32 0.0, %v1741
    %1743 = vmatmul.bf16.gmra.mxu0 %v1647
    %v1744 = vpop.f32.mrf.mxu0
    %v1745 = vadd.f32 0.0, %v1744
    %v1746 = vpop.f32.mrf.mxu0
    %v1747 = vadd.f32 0.0, %v1746
    %1748 = vmatmul.bf16.gmra.mxu0 %v1648
    %v1749 = vpop.f32.mrf.mxu0
    %v1750 = vadd.f32 0.0, %v1749
    %v1751 = vpop.f32.mrf.mxu0
    %v1752 = vadd.f32 0.0, %v1751
    %1753 = vmatmul.bf16.gmra.mxu0 %v1649
    %v1754 = vpop.f32.mrf.mxu0
    %v1755 = vadd.f32 0.0, %v1754
    %v1756 = vpop.f32.mrf.mxu0
    %v1757 = vadd.f32 0.0, %v1756
    %1758 = vmatmul.bf16.gmra.mxu0 %v1650
    %v1759 = vpop.f32.mrf.mxu0
    %v1760 = vadd.f32 0.0, %v1759
    %v1761 = vpop.f32.mrf.mxu0
    %v1762 = vadd.f32 0.0, %v1761
    %1763 = vdwg.mxu0
    %v1764 = vld [vmem:[#allocation9] sm:$0xff]
    %v1765 = vld [vmem:[#allocation9 + $0x8] sm:$0xff]
    %v1766 = vld [vmem:[#allocation9 + $0x10] sm:$0xff]
    %v1767 = vld [vmem:[#allocation9 + $0x18] sm:$0xff]
    %v1768 = vld [vmem:[#allocation9 + $0x20] sm:$0xff]
    %v1769 = vld [vmem:[#allocation9 + $0x28] sm:$0xff]
    %v1770 = vld [vmem:[#allocation9 + $0x30] sm:$0xff]
    %v1771 = vld [vmem:[#allocation9 + $0x38] sm:$0xff]
    %v1772 = vld [vmem:[#allocation9 + $0x40] sm:$0xff]
    %v1773 = vld [vmem:[#allocation9 + $0x48] sm:$0xff]
    %v1774 = vld [vmem:[#allocation9 + $0x50] sm:$0xff]
    %v1775 = vld [vmem:[#allocation9 + $0x58] sm:$0xff]
    %v1776 = vld [vmem:[#allocation9 + $0x60] sm:$0xff]
    %v1777 = vld [vmem:[#allocation9 + $0x68] sm:$0xff]
    %v1778 = vld [vmem:[#allocation9 + $0x70] sm:$0xff]
    %v1779 = vld [vmem:[#allocation9 + $0x78] sm:$0xff]
    %1796 = vrot.lane.b32.xlu0 %v1685, 64
    %v1797 = vpop.permute.xlu0 %1796
    %1798 = vrot.lane.b32.xlu0 %v1687, 64
    %v1799 = vpop.permute.xlu0 %1798
    %1800 = vrot.lane.b32.xlu0 %v1690, 64
    %v1801 = vpop.permute.xlu0 %1800
    %1802 = vrot.lane.b32.xlu0 %v1692, 64
    %v1803 = vpop.permute.xlu0 %1802
    %1804 = vrot.lane.b32.xlu0 %v1695, 64
    %v1805 = vpop.permute.xlu0 %1804
    %1806 = vrot.lane.b32.xlu0 %v1697, 64
    %v1807 = vpop.permute.xlu0 %1806
    %1808 = vrot.lane.b32.xlu0 %v1700, 64
    %v1809 = vpop.permute.xlu0 %1808
    %1810 = vrot.lane.b32.xlu0 %v1702, 64
    %v1811 = vpop.permute.xlu0 %1810
    %1812 = vrot.lane.b32.xlu0 %v1705, 64
    %v1813 = vpop.permute.xlu0 %1812
    %1814 = vrot.lane.b32.xlu0 %v1707, 64
    %v1815 = vpop.permute.xlu0 %1814
    %1816 = vrot.lane.b32.xlu0 %v1710, 64
    %v1817 = vpop.permute.xlu0 %1816
    %1818 = vrot.lane.b32.xlu0 %v1712, 64
    %v1819 = vpop.permute.xlu0 %1818
    %1820 = vrot.lane.b32.xlu0 %v1715, 64
    %v1821 = vpop.permute.xlu0 %1820
    %1822 = vrot.lane.b32.xlu0 %v1717, 64
    %v1823 = vpop.permute.xlu0 %1822
    %1824 = vrot.lane.b32.xlu0 %v1720, 64
    %v1825 = vpop.permute.xlu0 %1824
    %1826 = vrot.lane.b32.xlu0 %v1722, 64
    %v1827 = vpop.permute.xlu0 %1826
    %v1844 = vadd.f32 %v1764, %v1797
    %v1845 = vadd.f32 %v1765, %v1799
    %v1846 = vadd.f32 %v1766, %v1801
    %v1847 = vadd.f32 %v1767, %v1803
    %v1848 = vadd.f32 %v1768, %v1805
    %v1849 = vadd.f32 %v1769, %v1807
    %v1850 = vadd.f32 %v1770, %v1809
    %v1851 = vadd.f32 %v1771, %v1811
    %v1852 = vadd.f32 %v1772, %v1813
    %v1853 = vadd.f32 %v1773, %v1815
    %v1854 = vadd.f32 %v1774, %v1817
    %v1855 = vadd.f32 %v1775, %v1819
    %v1856 = vadd.f32 %v1776, %v1821
    %v1857 = vadd.f32 %v1777, %v1823
    %v1858 = vadd.f32 %v1778, %v1825
    %v1859 = vadd.f32 %v1779, %v1827
    %vm1860 = vcmask 1048064
    %1861 = vst.msk [vmem:[#allocation14] sm:$0xff] %vm1860, %v1844
    %1862 = vst.msk [vmem:[#allocation14 + $0x8] sm:$0xff] %vm1860, %v1845
    %1863 = vst.msk [vmem:[#allocation14 + $0x10] sm:$0xff] %vm1860, %v1846
    %1864 = vst.msk [vmem:[#allocation14 + $0x18] sm:$0xff] %vm1860, %v1847
    %1865 = vst.msk [vmem:[#allocation14 + $0x20] sm:$0xff] %vm1860, %v1848
    %1866 = vst.msk [vmem:[#allocation14 + $0x28] sm:$0xff] %vm1860, %v1849
    %1867 = vst.msk [vmem:[#allocation14 + $0x30] sm:$0xff] %vm1860, %v1850
    %1868 = vst.msk [vmem:[#allocation14 + $0x38] sm:$0xff] %vm1860, %v1851
    %1869 = vst.msk [vmem:[#allocation14 + $0x40] sm:$0xff] %vm1860, %v1852
    %1870 = vst.msk [vmem:[#allocation14 + $0x48] sm:$0xff] %vm1860, %v1853
    %1871 = vst.msk [vmem:[#allocation14 + $0x50] sm:$0xff] %vm1860, %v1854
    %1872 = vst.msk [vmem:[#allocation14 + $0x58] sm:$0xff] %vm1860, %v1855
    %1873 = vst.msk [vmem:[#allocation14 + $0x60] sm:$0xff] %vm1860, %v1856
    %1874 = vst.msk [vmem:[#allocation14 + $0x68] sm:$0xff] %vm1860, %v1857
    %1875 = vst.msk [vmem:[#allocation14 + $0x70] sm:$0xff] %vm1860, %v1858
    %1876 = vst.msk [vmem:[#allocation14 + $0x78] sm:$0xff] %vm1860, %v1859
    %v1877 = vsub.f32 %v1725, %v1685
    %v1878 = vsub.f32 %v1727, %v1687
    %v1879 = vsub.f32 %v1730, %v1690
    %v1880 = vsub.f32 %v1732, %v1692
    %v1881 = vsub.f32 %v1735, %v1695
    %v1882 = vsub.f32 %v1737, %v1697
    %v1883 = vsub.f32 %v1740, %v1700
    %v1884 = vsub.f32 %v1742, %v1702
    %v1885 = vsub.f32 %v1745, %v1705
    %v1886 = vsub.f32 %v1747, %v1707
    %v1887 = vsub.f32 %v1750, %v1710
    %v1888 = vsub.f32 %v1752, %v1712
    %v1889 = vsub.f32 %v1755, %v1715
    %v1890 = vsub.f32 %v1757, %v1717
    %v1891 = vsub.f32 %v1760, %v1720
    %v1892 = vsub.f32 %v1762, %v1722
    %v1893 = vadd.f32 %v1877, 12.0
    %v1894 = vadd.f32 %v1878, 12.0
    %v1895 = vadd.f32 %v1879, 12.0
    %v1896 = vadd.f32 %v1880, 12.0
    %v1897 = vadd.f32 %v1881, 12.0
    %v1898 = vadd.f32 %v1882, 12.0
    %v1899 = vadd.f32 %v1883, 12.0
    %v1900 = vadd.f32 %v1884, 12.0
    %v1901 = vadd.f32 %v1885, 12.0
    %v1902 = vadd.f32 %v1886, 12.0
    %v1903 = vadd.f32 %v1887, 12.0
    %v1904 = vadd.f32 %v1888, 12.0
    %v1905 = vadd.f32 %v1889, 12.0
    %v1906 = vadd.f32 %v1890, 12.0
    %v1907 = vadd.f32 %v1891, 12.0
    %v1908 = vadd.f32 %v1892, 12.0
    %v1909 = vmax.f32 %v1893, 0.0
    %v1910 = vmax.f32 %v1894, 0.0
    %v1911 = vmax.f32 %v1895, 0.0
    %v1912 = vmax.f32 %v1896, 0.0
    %v1913 = vmax.f32 %v1897, 0.0
    %v1914 = vmax.f32 %v1898, 0.0
    %v1915 = vmax.f32 %v1899, 0.0
    %v1916 = vmax.f32 %v1900, 0.0
    %v1917 = vmax.f32 %v1901, 0.0
    %v1918 = vmax.f32 %v1902, 0.0
    %v1919 = vmax.f32 %v1903, 0.0
    %v1920 = vmax.f32 %v1904, 0.0
    %v1921 = vmax.f32 %v1905, 0.0
    %v1922 = vmax.f32 %v1906, 0.0
    %v1923 = vmax.f32 %v1907, 0.0
    %v1924 = vmax.f32 %v1908, 0.0
    %v1925 = vadd.f32 %v1193, %v1909
    %v1926 = vadd.f32 %v1194, %v1910
    %v1927 = vadd.f32 %v1195, %v1911
    %v1928 = vadd.f32 %v1196, %v1912
    %v1929 = vadd.f32 %v1197, %v1913
    %v1930 = vadd.f32 %v1198, %v1914
    %v1931 = vadd.f32 %v1199, %v1915
    %v1932 = vadd.f32 %v1200, %v1916
    %v1933 = vadd.f32 %v1201, %v1917
    %v1934 = vadd.f32 %v1202, %v1918
    %v1935 = vadd.f32 %v1203, %v1919
    %v1936 = vadd.f32 %v1204, %v1920
    %v1937 = vadd.f32 %v1205, %v1921
    %v1938 = vadd.f32 %v1206, %v1922
    %v1939 = vadd.f32 %v1207, %v1923
    %v1940 = vadd.f32 %v1208, %v1924
    %v1941 = vsel %vm549, %v1925, 0.0
    %v1942 = vsel %vm549, %v1926, 0.0
    %v1943 = vadd.f32 %v1941, %v1942
    %v1944 = vsel %vm549, %v1927, 0.0
    %v1945 = vadd.f32 %v1943, %v1944
    %v1946 = vsel %vm549, %v1928, 0.0
    %v1947 = vadd.f32 %v1945, %v1946
    %v1948 = vsel %vm549, %v1929, 0.0
    %v1949 = vadd.f32 %v1947, %v1948
    %v1950 = vsel %vm549, %v1930, 0.0
    %v1951 = vadd.f32 %v1949, %v1950
    %v1952 = vsel %vm549, %v1931, 0.0
    %v1953 = vadd.f32 %v1951, %v1952
    %v1954 = vsel %vm549, %v1932, 0.0
    %v1955 = vadd.f32 %v1953, %v1954
    %v1956 = vsel %vm549, %v1933, 0.0
    %v1957 = vadd.f32 %v1955, %v1956
    %v1958 = vsel %vm549, %v1934, 0.0
    %v1959 = vadd.f32 %v1957, %v1958
    %v1960 = vsel %vm549, %v1935, 0.0
    %v1961 = vadd.f32 %v1959, %v1960
    %v1962 = vsel %vm549, %v1936, 0.0
    %v1963 = vadd.f32 %v1961, %v1962
    %v1964 = vsel %vm549, %v1937, 0.0
    %v1965 = vadd.f32 %v1963, %v1964
    %v1966 = vsel %vm549, %v1938, 0.0
    %v1967 = vadd.f32 %v1965, %v1966
    %v1968 = vsel %vm549, %v1939, 0.0
    %v1969 = vadd.f32 %v1967, %v1968
    %v1970 = vsel %vm549, %v1940, 0.0
    %v1971 = vadd.f32 %v1969, %v1970
    %1972 = vadd.xlane.f32.xlu0 %v1971
    %v1973 = vpop.xlane.xlu0 %1972
    %v1974 = vrot.slane %v1973, 4
    %v1975 = vadd.f32 %v1973, %v1974
    %v1976 = vrot.slane %v1975, 2
    %v1977 = vadd.f32 %v1975, %v1976
    %v1978 = vrot.slane %v1977, 1
    %v1979 = vadd.f32 %v1977, %v1978
    %s1980 = vtos %v1979
    %s1981 = scalar_lea.smem [#allocation15], 0
    %1982 = sst [smem:[%s1981]] %s1980
    // Predicated region
    $region50: #{tpu_custom_call.1} parent=1 // pred_check
      _
    $region51: #{tpu_custom_call.1} parent=1 // pred_check_branch
      %1984 = sbr.rel (0) target = $region53
    $region52: #{tpu_custom_call.1} parent=1 // pred_region
      %1986 = vsyncadd [#allocation4], 0
      %s1987 = sshll.u32 [#allocation14], 4
      %s1988 = int_to_ptr.vmem [resolvable:$true] %s1987
      %s1989 = sshll.u32 %s6, 4
      %s1990 = int_to_ptr.hbm [resolvable:$true] %s1989
      %1995 = dma.vmem_to_hbm [thread:$0]  %s1988, 2048, %s1990, [#allocation4], 128, 128, 8
    $region53: #{tpu_custom_call.1} parent=1 // pred_fallthru
      _
    // Predicated region
    $region54: #{tpu_custom_call.1} parent=1 // pred_check
      _
    $region55: #{tpu_custom_call.1} parent=1 // pred_check_branch
      %1997 = sbr.rel (0) target = $region57
    $region56: #{tpu_custom_call.1} parent=1 // pred_region
      %1999 = vsyncadd [#allocation5], 0
      %s2001 = sshll.u32 %s7, 4
      %s2002 = int_to_ptr.hbm [resolvable:$true] %s2001
      %2004 = dma.smem_to_hbm [#allocation15], 16, %s2002, [#allocation5]
    $region57: #{tpu_custom_call.1} parent=1 // pred_fallthru
      _
    // Predicated region
    $region58: #{tpu_custom_call.1} parent=1 // pred_check
      _
    $region59: #{tpu_custom_call.1} parent=1 // pred_check_branch
      %2006 = sbr.rel (0) target = $region61
    $region60: #{tpu_custom_call.1} parent=1 // pred_region
      %2008 = dma.done [#allocation4], 2048
    $region61: #{tpu_custom_call.1} parent=1 // pred_fallthru
      _
    // Predicated region
    $region62: #{tpu_custom_call.1} parent=1 // pred_check
      _
    $region63: #{tpu_custom_call.1} parent=1 // pred_check_branch
      %2010 = sbr.rel (0) target = $region65
    $region64: #{tpu_custom_call.1} parent=1 // pred_region
      %2012 = dma.done [#allocation5], 16
    $region65: #{tpu_custom_call.1} parent=1 // pred_fallthru
      _
    %2013 = sfence
    %2014 = vsyncpa [#allocation3], 1
    %2015 = vsyncpa [#allocation7], 1
    %2016 = vsyncpa [#allocation10], 1
    %2017 = vsyncpa [#allocation13], 1
    %2018 = vsyncpa [#allocation4], 1
    %2019 = vsyncpa [#allocation5], 1

</llo_original>
